<compile_context>
chip_gen: v7x
topology: tpu7x:2x2x1
jax: 0.10.0
libtpu: 0.0.40
codegen_flags: <defaults>
</compile_context>

<pallas_src>
import functools

import jax
import jax.numpy as jnp
from jax.experimental import pallas as pl
from jax.experimental.pallas import tpu as pltpu

NUM_OBJ_CLASSES = 4
NUM_VERB_CLASSES = 6
NUM_QUERIES = 8
EOS_COEF = 0.1
ALPHA = 0.5

_LANE = 128


# ---------------------------------------------------------------------------
# Fused kernel: weighted CE + cardinality + focal (verbs) + L1/GIoU box losses
# ---------------------------------------------------------------------------
def _fused_loss_kernel(ni_ref, idx_ref, obj_logits_ref, verb_logits_ref,
                       mverbs_ref, pred_boxes_ref, tgt_boxes_ref, out_ref,
                       *, eos_coef, alpha, q_per_image):
    BQ, C1 = obj_logits_ref.shape          # flat (B*Q, num_obj_classes + 1)
    M_pad = mverbs_ref.shape[0]            # fixed lane-dense match padding
    B = BQ // q_per_image

    idx = idx_ref[...]                     # (3, M_pad) int32
    key_row = idx[0:1, :]                  # b*Q + src_query, -1 for padding
    cls_row = idx[1:2, :]                  # matched target obj class
    lens_row = idx[2:3, :]                 # per-image target counts in lanes 0..B-1
    valid_row = key_row >= 0               # (1, M_pad)
    nvalid_f = jnp.sum(valid_row.astype(jnp.float32))

    inv_ni = 1.0 / ni_ref[0]               # num_interactions from SMEM (dynamic)

    # ---- vectorized match: one (B*Q, M_pad) iota compare, no serial scatters
    f_iota = jax.lax.broadcasted_iota(jnp.int32, (BQ, M_pad), 0)
    match = f_iota == key_row              # padded keys (-1) never hit
    match_f = match.astype(jnp.float32)

    matched = jnp.sum(match_f, axis=1, keepdims=True) > 0.0            # (BQ, 1)
    cls_f = cls_row.astype(jnp.float32)
    tc_f = jnp.sum(jnp.where(match, cls_f, 0.0), axis=1, keepdims=True)
    target_classes = jnp.where(matched, tc_f, jnp.float32(C1 - 1)).astype(jnp.int32)

    # ---- loss_obj_labels: weighted cross-entropy + top-1 accuracy -----------
    logits = obj_logits_ref[...]                                        # (BQ, C1)
    cls_iota = jax.lax.broadcasted_iota(jnp.int32, (BQ, C1), 1)
    last_mask = cls_iota == (C1 - 1)
    onehot = cls_iota == target_classes

    last_logit = jnp.sum(jnp.where(last_mask, logits, 0.0), axis=1, keepdims=True)
    max_front = jnp.max(jnp.where(last_mask, jnp.float32(-1e30), logits),
                        axis=1, keepdims=True)
    m_full = jnp.maximum(max_front, last_logit)
    lse = jnp.log(jnp.sum(jnp.exp(logits - m_full), axis=1, keepdims=True)) + m_full
    tgt_logit = jnp.sum(jnp.where(onehot, logits, 0.0), axis=1, keepdims=True)
    wt = jnp.where(target_classes == (C1 - 1), jnp.float32(eos_coef), jnp.float32(1.0))

    loss_obj_ce = jnp.sum(wt * (lse - tgt_logit)) / jnp.sum(wt)

    correct = jnp.where(matched, (tgt_logit >= m_full).astype(jnp.float32), 0.0)
    obj_class_error = 100.0 - 100.0 * jnp.sum(correct) / jnp.maximum(nvalid_f, 1.0)

    # ---- loss_obj_cardinality (vectorized per-image sums, lane-dense lens) --
    nonlast = (max_front >= last_logit).astype(jnp.float32)             # (BQ, 1)
    f_col = jax.lax.broadcasted_iota(jnp.int32, (BQ, B), 0)
    b_row = jax.lax.broadcasted_iota(jnp.int32, (BQ, B), 1)
    in_batch = (f_col >= b_row * q_per_image) & (f_col < (b_row + 1) * q_per_image)
    card_row = jnp.sum(jnp.where(in_batch, nonlast, 0.0), axis=0, keepdims=True)  # (1,B)
    lens_b = lens_row[:, :B].astype(jnp.float32)                         # (1, B)
    obj_cardinality_error = jnp.sum(jnp.abs(card_row - lens_b)) / B

    # ---- loss_verb_labels: CornerNet focal, dense-neg pass + matched fix-up --
    x = verb_logits_ref[...]                                             # (BQ, V)
    sp = jnp.log(1.0 + jnp.exp(-jnp.abs(x)))                             # softplus core
    log_1mp = jnp.minimum(-x, 0.0) - sp                                  # log(1 - sigmoid)
    p = jnp.exp(jnp.minimum(x, 0.0) - sp)                                # sigmoid via exp(log p)
    neg_sum = jnp.sum((1.0 - alpha) * log_1mp * p * p)                   # all-negative term

    # gather the M matched logit rows with a one-hot MXU matmul (match^T @ x)
    xm = jax.lax.dot_general(match_f, x, (((0,), (0,)), ((), ())),
                             preferred_element_type=jnp.float32)         # (M_pad, V)
    gt = mverbs_ref[...]                                                 # (M_pad, V), pad rows 0
    spm = jnp.log(1.0 + jnp.exp(-jnp.abs(xm)))
    log_pm = jnp.minimum(xm, 0.0) - spm
    log_1mpm = jnp.minimum(-xm, 0.0) - spm
    pm = jnp.exp(log_pm)
    pos_mask = gt == 1.0
    corr = jnp.where(pos_mask,
                     alpha * log_pm * jnp.square(1.0 - pm)
                     - (1.0 - alpha) * log_1mpm * pm * pm,
                     0.0)
    total = neg_sum + jnp.sum(corr)
    npos = jnp.sum(pos_mask.astype(jnp.float32))
    loss_verb_ce = jnp.where(npos == 0.0, -total, -total / jnp.maximum(npos, 1.0))

    # ---- loss_sub_obj_boxes: in-kernel gather + L1 + paired GIoU ------------
    # coordinate-major matched source boxes: (8, M_pad) = pred_boxes^T @ match
    src_cm = jax.lax.dot_general(pred_boxes_ref[...], match_f,
                                 (((0,), (0,)), ((), ())),
                                 preferred_element_type=jnp.float32)     # (8, M_pad)
    tb = tgt_boxes_ref[...]                                              # (8, M_pad)

    def xyxy(arr, base):
        cx = arr[base + 0:base + 1, :]
        cy = arr[base + 1:base + 2, :]
        w = arr[base + 2:base + 3, :]
        h = arr[base + 3:base + 4, :]
        return cx - 0.5 * w, cy - 0.5 * h, cx + 0.5 * w, cy + 0.5 * h

    def paired_giou(src_base, tgt_base):
        sx0, sy0, sx1, sy1 = xyxy(src_cm, src_base)
        tx0, ty0, tx1, ty1 = xyxy(tb, tgt_base)
        area_s = (sx1 - sx0) * (sy1 - sy0)
        area_t = (tx1 - tx0) * (ty1 - ty0)
        iw = jnp.maximum(jnp.minimum(sx1, tx1) - jnp.maximum(sx0, tx0), 0.0)
        ih = jnp.maximum(jnp.minimum(sy1, ty1) - jnp.maximum(sy0, ty0), 0.0)
        inter = iw * ih
        union = area_s + area_t - inter
        iou = inter * pl.reciprocal(union + 1e-7, approx=True)
        ew = jnp.maximum(sx1, tx1) - jnp.minimum(sx0, tx0)
        eh = jnp.maximum(sy1, ty1) - jnp.minimum(sy0, ty0)
        enclose = ew * eh
        return iou - (enclose - union) * pl.reciprocal(enclose + 1e-7, approx=True)

    exist = jnp.sum(jnp.abs(tb[4:8, :]), axis=0, keepdims=True) > 0.0    # tgt obj box != 0
    valid_exist = valid_row & exist

    sub_l1 = jnp.sum(jnp.where(valid_row, jnp.abs(src_cm[0:4, :] - tb[0:4, :]), 0.0))
    obj_l1 = jnp.sum(jnp.where(valid_exist, jnp.abs(src_cm[4:8, :] - tb[4:8, :]), 0.0))
    exist_sum = jnp.sum(jnp.where(valid_exist, 1.0, 0.0))

    sub_giou = jnp.sum(jnp.where(valid_row, 1.0 - paired_giou(0, 0), 0.0))
    obj_giou = jnp.sum(jnp.where(valid_exist, 1.0 - paired_giou(4, 4), 0.0))

    loss_sub_bbox = sub_l1 * inv_ni
    loss_obj_bbox = obj_l1 / (exist_sum + 1e-4)
    loss_sub_giou = sub_giou * inv_ni
    loss_obj_giou = obj_giou / (exist_sum + 1e-4)

    # ---- pack every final loss scalar into one lane-dense (1, 128) row ------
    results = (loss_obj_ce, obj_class_error, obj_cardinality_error, loss_verb_ce,
               loss_sub_bbox, loss_obj_bbox, loss_sub_giou, loss_obj_giou)
    out_lane = jax.lax.broadcasted_iota(jnp.int32, out_ref.shape, 1)
    row = jnp.zeros(out_ref.shape, jnp.float32)
    for i, v in enumerate(results):
        row = jnp.where(out_lane == i, v, row)
    out_ref[...] = row


# ---------------------------------------------------------------------------
# Forward-pass wrapper (matches SetCriterionHOI.forward, non-HOI branch)
# ---------------------------------------------------------------------------
def set_criterion_hoi_losses(outputs, targets, indices,
                             num_obj_classes=NUM_OBJ_CLASSES,
                             eos_coef=EOS_COEF, alpha=ALPHA):
    del num_obj_classes  # derived in-kernel from the logit shape (C1 - 1)
    pred_obj_logits = outputs['pred_obj_logits'].astype(jnp.float32)
    pred_verb_logits = outputs['pred_verb_logits'].astype(jnp.float32)
    B, Q, C1 = pred_obj_logits.shape
    V = pred_verb_logits.shape[-1]
    BQ = B * Q

    # fixed compile-time match padding: function of (B, Q) only -> one compile
    M_PAD = max(_LANE, ((BQ + _LANE - 1) // _LANE) * _LANE)

    # _get_src_permutation_idx (matcher output)
    batch_idx = jnp.concatenate(
        [jnp.full_like(src, i) for i, (src, _) in enumerate(indices)]).astype(jnp.int32)
    src_idx = jnp.concatenate([src for src, _ in indices]).astype(jnp.int32)
    M = int(batch_idx.shape[0])
    key = batch_idx * Q + src_idx                                      # flat query id

    tgt_cls = jnp.concatenate(
        [t['obj_labels'][J] for t, (_, J) in zip(targets, indices)]).astype(jnp.int32)
    lens = jnp.array([int(t['obj_labels'].shape[0]) for t in targets], jnp.int32)

    idx_i32 = jnp.stack([
        jnp.pad(key, (0, M_PAD - M), constant_values=-1),
        jnp.pad(tgt_cls, (0, M_PAD - M), constant_values=0),
        jnp.pad(lens, (0, M_PAD - B), constant_values=0),
    ])                                                                  # (3, M_PAD)

    # matched verb label rows (padded rows are zeros; never selected in-kernel)
    mverbs = jnp.concatenate(
        [t['verb_labels'][J] for t, (_, J) in zip(targets, indices)],
        axis=0).astype(jnp.float32)
    mverbs = jnp.pad(mverbs, ((0, M_PAD - M), (0, 0)))

    # matched TARGET boxes, coordinate-major (8, M_PAD): tgt_sub(0:4) / tgt_obj(4:8)
    tgt_sub = jnp.concatenate(
        [t['sub_boxes'][J] for t, (_, J) in zip(targets, indices)], axis=0).astype(jnp.float32)
    tgt_obj = jnp.concatenate(
        [t['obj_boxes'][J] for t, (_, J) in zip(targets, indices)], axis=0).astype(jnp.float32)
    tgt_boxes = jnp.pad(jnp.concatenate([tgt_sub.T, tgt_obj.T], axis=0),
                        ((0, 0), (0, M_PAD - M)))

    # prediction boxes passed WHOLE; the matched-source gather happens in-kernel
    pred_boxes = jnp.concatenate(
        [outputs['pred_sub_boxes'], outputs['pred_obj_boxes']],
        axis=-1).astype(jnp.float32).reshape(BQ, 8)

    # num_interactions (world_size == 1, clamp min=1), passed as data (no recompile)
    num_interactions = jnp.full(
        (1,), float(max(sum(int(t['hoi_labels'].shape[0]) for t in targets), 1)),
        jnp.float32)

    smem = pl.BlockSpec(memory_space=pltpu.MemorySpace.SMEM)
    vmem = pl.BlockSpec(memory_space=pltpu.MemorySpace.VMEM)
    out = pl.pallas_call(
        functools.partial(_fused_loss_kernel, eos_coef=float(eos_coef),
                          alpha=float(alpha), q_per_image=Q),
        out_shape=jax.ShapeDtypeStruct((1, _LANE), jnp.float32),
        in_specs=[smem, vmem, vmem, vmem, vmem, vmem, vmem],
        out_specs=vmem,
    )(num_interactions, idx_i32, pred_obj_logits.reshape(BQ, C1),
      pred_verb_logits.reshape(BQ, V), mverbs, pred_boxes, tgt_boxes)

    vec = out[0]
    return {
        'loss_obj_ce': vec[0],
        'obj_class_error': vec[1],
        'obj_cardinality_error': vec[2],
        'loss_verb_ce': vec[3],
        'loss_sub_bbox': vec[4],
        'loss_obj_bbox': vec[5],
        'loss_sub_giou': vec[6],
        'loss_obj_giou': vec[7],
    }


if __name__ == "__main__":
    key = jax.random.PRNGKey(0)
    ks = jax.random.split(key, 10)
    B, Q, C, V = 2, NUM_QUERIES, NUM_OBJ_CLASSES, NUM_VERB_CLASSES

    outputs = {
        'pred_obj_logits': jax.random.normal(ks[0], (B, Q, C + 1), jnp.float32),
        'pred_verb_logits': jax.random.normal(ks[1], (B, Q, V), jnp.float32),
        'pred_sub_boxes': jax.nn.sigmoid(
            jax.random.normal(ks[2], (B, Q, 4), jnp.float32)),
        'pred_obj_boxes': jax.nn.sigmoid(
            jax.random.normal(ks[3], (B, Q, 4), jnp.float32)),
    }

    targets = []
    for bi, (n, k_off) in enumerate(((3, 4), (2, 7))):
        kk = jax.random.split(ks[k_off], 4)
        obj_labels = jax.random.randint(kk[0], (n,), 0, C).astype(jnp.int32)
        verb_labels = jax.random.bernoulli(kk[1], 0.4, (n, V)).astype(jnp.float32)
        sub_boxes = jax.nn.sigmoid(jax.random.normal(kk[2], (n, 4), jnp.float32))
        obj_boxes = jax.nn.sigmoid(jax.random.normal(kk[3], (n, 4), jnp.float32))
        if bi == 1:
            # exercise the exist_obj_boxes masking path (all-zero target obj box)
            obj_boxes = obj_boxes.at[0].set(0.0)
        targets.append({'obj_labels': obj_labels,
                        'verb_labels': verb_labels,
                        'sub_boxes': sub_boxes,
                        'obj_boxes': obj_boxes,
                        'hoi_labels': verb_labels})

    # deterministic matcher output (src query idx, tgt gt idx) per image
    indices = [
        (jnp.array([1, 4, 6], jnp.int32), jnp.array([0, 2, 1], jnp.int32)),
        (jnp.array([0, 5], jnp.int32), jnp.array([1, 0], jnp.int32)),
    ]

    losses = set_criterion_hoi_losses(outputs, targets, indices)
    losses = {k: jax.block_until_ready(v) for k, v in losses.items()}
    print("KERNEL_OK")
</pallas_src>

<mosaic_0001>
module attributes {stable_mosaic.version = 11 : i64} {
  func.func @_fused_loss_kernel(%arg0: memref<1xf32, #tpu.memory_space<smem>>, %arg1: memref<3x128xi32, #tpu.memory_space<vmem>>, %arg2: memref<16x5xf32, #tpu.memory_space<vmem>>, %arg3: memref<16x6xf32, #tpu.memory_space<vmem>>, %arg4: memref<128x6xf32, #tpu.memory_space<vmem>>, %arg5: memref<16x8xf32, #tpu.memory_space<vmem>>, %arg6: memref<8x128xf32, #tpu.memory_space<vmem>>, %arg7: memref<1x128xf32, #tpu.memory_space<vmem>>) attributes {dimension_semantics = [], scalar_prefetch = 0 : i64, scratch_operands = 0 : i64, tpu.core_type = #tpu.core_type<tc>} {
    %c0 = arith.constant 0 : index
    %c0_0 = arith.constant 0 : index
    %0 = vector.load %arg1[%c0, %c0_0] : memref<3x128xi32, #tpu.memory_space<vmem>>, vector<3x128xi32>
    %1 = vector.extract_strided_slice %0 {offsets = [0, 0], sizes = [1, 128], strides = [1, 1]} : vector<3x128xi32> to vector<1x128xi32>
    %2 = vector.extract_strided_slice %0 {offsets = [1, 0], sizes = [1, 128], strides = [1, 1]} : vector<3x128xi32> to vector<1x128xi32>
    %3 = vector.extract_strided_slice %0 {offsets = [2, 0], sizes = [1, 128], strides = [1, 1]} : vector<3x128xi32> to vector<1x128xi32>
    %c0_i32 = arith.constant 0 : i32
    %4 = vector.broadcast %c0_i32 : i32 to vector<1x128xi32>
    %5 = arith.cmpi sge, %1, %4 : vector<1x128xi32>
    %6 = arith.extui %5 : vector<1x128xi1> to vector<1x128xi32>
    %7 = arith.sitofp %6 : vector<1x128xi32> to vector<1x128xf32>
    %8 = vector.shape_cast %7 : vector<1x128xf32> to vector<1x1x128xf32>
    %cst = arith.constant dense<0.000000e+00> : vector<1xf32>
    %9 = vector.multi_reduction <add>, %8, %cst [1, 2] : vector<1x1x128xf32> to vector<1xf32>
    %10 = vector.shape_cast %9 : vector<1xf32> to vector<1x1x1xf32>
    %11 = vector.extract %10[0, 0, 0] : f32 from vector<1x1x1xf32>
    %c0_1 = arith.constant 0 : index
    %12 = memref.load %arg0[%c0_1] : memref<1xf32, #tpu.memory_space<smem>>
    %cst_2 = arith.constant 1.000000e+00 : f32
    %13 = arith.divf %cst_2, %12 : f32
    %14 = tpu.iota {dimensions = array<i32: 0>} : vector<16x128xi32>
    %15 = vector.broadcast %1 : vector<1x128xi32> to vector<16x128xi32>
    %16 = arith.cmpi eq, %14, %15 : vector<16x128xi32>
    %17 = arith.extui %16 : vector<16x128xi1> to vector<16x128xi32>
    %18 = arith.sitofp %17 : vector<16x128xi32> to vector<16x128xf32>
    %cst_3 = arith.constant dense<0.000000e+00> : vector<16xf32>
    %19 = vector.multi_reduction <add>, %18, %cst_3 [1] : vector<16x128xf32> to vector<16xf32>
    %20 = vector.shape_cast %19 : vector<16xf32> to vector<16x1xf32>
    %cst_4 = arith.constant 0.000000e+00 : f32
    %21 = vector.broadcast %cst_4 : f32 to vector<16x1xf32>
    %22 = arith.cmpf ogt, %20, %21 : vector<16x1xf32>
    %23 = arith.sitofp %2 : vector<1x128xi32> to vector<1x128xf32>
    %cst_5 = arith.constant 0.000000e+00 : f32
    %24 = vector.shape_cast %23 : vector<1x128xf32> to vector<1x128xf32>
    %25 = vector.broadcast %24 : vector<1x128xf32> to vector<16x128xf32>
    %26 = vector.broadcast %cst_5 : f32 to vector<16x128xf32>
    %27 = arith.select %16, %25, %26 : vector<16x128xi1>, vector<16x128xf32>
    %cst_6 = arith.constant dense<0.000000e+00> : vector<16xf32>
    %28 = vector.multi_reduction <add>, %27, %cst_6 [1] : vector<16x128xf32> to vector<16xf32>
    %29 = vector.shape_cast %28 : vector<16xf32> to vector<16x1xf32>
    %cst_7 = arith.constant 4.000000e+00 : f32
    %30 = vector.broadcast %cst_7 : f32 to vector<16x1xf32>
    %31 = arith.select %22, %29, %30 : vector<16x1xi1>, vector<16x1xf32>
    %32 = arith.fptosi %31 : vector<16x1xf32> to vector<16x1xi32>
    %c0_8 = arith.constant 0 : index
    %c0_9 = arith.constant 0 : index
    %33 = vector.load %arg2[%c0_8, %c0_9] : memref<16x5xf32, #tpu.memory_space<vmem>>, vector<16x5xf32>
    %34 = tpu.iota {dimensions = array<i32: 1>} : vector<16x5xi32>
    %c4_i32 = arith.constant 4 : i32
    %35 = vector.broadcast %c4_i32 : i32 to vector<16x5xi32>
    %36 = arith.cmpi eq, %34, %35 : vector<16x5xi32>
    %37 = vector.broadcast %32 : vector<16x1xi32> to vector<16x5xi32>
    %38 = arith.cmpi eq, %34, %37 : vector<16x5xi32>
    %cst_10 = arith.constant 0.000000e+00 : f32
    %39 = vector.broadcast %cst_10 : f32 to vector<16x5xf32>
    %40 = arith.select %36, %33, %39 : vector<16x5xi1>, vector<16x5xf32>
    %cst_11 = arith.constant dense<0.000000e+00> : vector<16xf32>
    %41 = vector.multi_reduction <add>, %40, %cst_11 [1] : vector<16x5xf32> to vector<16xf32>
    %42 = vector.shape_cast %41 : vector<16xf32> to vector<16x1xf32>
    %cst_12 = arith.constant -1.000000e+30 : f32
    %43 = vector.broadcast %cst_12 : f32 to vector<16x5xf32>
    %44 = arith.select %36, %43, %33 : vector<16x5xi1>, vector<16x5xf32>
    %cst_13 = arith.constant dense<0xFF800000> : vector<16xf32>
    %45 = vector.multi_reduction <maximumf>, %44, %cst_13 [1] : vector<16x5xf32> to vector<16xf32>
    %46 = vector.shape_cast %45 : vector<16xf32> to vector<16x1xf32>
    %47 = arith.maximumf %46, %42 : vector<16x1xf32>
    %48 = vector.broadcast %47 : vector<16x1xf32> to vector<16x5xf32>
    %49 = arith.subf %33, %48 : vector<16x5xf32>
    %50 = math.exp %49 : vector<16x5xf32>
    %cst_14 = arith.constant dense<0.000000e+00> : vector<16xf32>
    %51 = vector.multi_reduction <add>, %50, %cst_14 [1] : vector<16x5xf32> to vector<16xf32>
    %52 = vector.shape_cast %51 : vector<16xf32> to vector<16x1xf32>
    %53 = math.log %52 : vector<16x1xf32>
    %54 = arith.addf %53, %47 : vector<16x1xf32>
    %cst_15 = arith.constant 0.000000e+00 : f32
    %55 = vector.broadcast %cst_15 : f32 to vector<16x5xf32>
    %56 = arith.select %38, %33, %55 : vector<16x5xi1>, vector<16x5xf32>
    %cst_16 = arith.constant dense<0.000000e+00> : vector<16xf32>
    %57 = vector.multi_reduction <add>, %56, %cst_16 [1] : vector<16x5xf32> to vector<16xf32>
    %58 = vector.shape_cast %57 : vector<16xf32> to vector<16x1xf32>
    %c4_i32_17 = arith.constant 4 : i32
    %59 = vector.broadcast %c4_i32_17 : i32 to vector<16x1xi32>
    %60 = arith.cmpi eq, %32, %59 : vector<16x1xi32>
    %cst_18 = arith.constant 1.000000e-01 : f32
    %cst_19 = arith.constant 1.000000e+00 : f32
    %61 = vector.broadcast %cst_18 : f32 to vector<16x1xf32>
    %62 = vector.broadcast %cst_19 : f32 to vector<16x1xf32>
    %63 = arith.select %60, %61, %62 : vector<16x1xi1>, vector<16x1xf32>
    %64 = arith.subf %54, %58 : vector<16x1xf32>
    %65 = arith.mulf %63, %64 : vector<16x1xf32>
    %66 = vector.shape_cast %65 : vector<16x1xf32> to vector<1x16x1xf32>
    %cst_20 = arith.constant dense<0.000000e+00> : vector<1xf32>
    %67 = vector.multi_reduction <add>, %66, %cst_20 [1, 2] : vector<1x16x1xf32> to vector<1xf32>
    %68 = vector.shape_cast %67 : vector<1xf32> to vector<1x1x1xf32>
    %69 = vector.extract %68[0, 0, 0] : f32 from vector<1x1x1xf32>
    %70 = vector.shape_cast %63 : vector<16x1xf32> to vector<1x16x1xf32>
    %cst_21 = arith.constant dense<0.000000e+00> : vector<1xf32>
    %71 = vector.multi_reduction <add>, %70, %cst_21 [1, 2] : vector<1x16x1xf32> to vector<1xf32>
    %72 = vector.shape_cast %71 : vector<1xf32> to vector<1x1x1xf32>
    %73 = vector.extract %72[0, 0, 0] : f32 from vector<1x1x1xf32>
    %74 = arith.divf %69, %73 : f32
    %75 = arith.cmpf oge, %58, %47 : vector<16x1xf32>
    %76 = arith.extui %75 : vector<16x1xi1> to vector<16x1xi32>
    %77 = arith.sitofp %76 : vector<16x1xi32> to vector<16x1xf32>
    %cst_22 = arith.constant 0.000000e+00 : f32
    %78 = vector.broadcast %cst_22 : f32 to vector<16x1xf32>
    %79 = arith.select %22, %77, %78 : vector<16x1xi1>, vector<16x1xf32>
    %80 = vector.shape_cast %79 : vector<16x1xf32> to vector<1x16x1xf32>
    %cst_23 = arith.constant dense<0.000000e+00> : vector<1xf32>
    %81 = vector.multi_reduction <add>, %80, %cst_23 [1, 2] : vector<1x16x1xf32> to vector<1xf32>
    %82 = vector.shape_cast %81 : vector<1xf32> to vector<1x1x1xf32>
    %83 = vector.extract %82[0, 0, 0] : f32 from vector<1x1x1xf32>
    %cst_24 = arith.constant 1.000000e+02 : f32
    %84 = arith.mulf %cst_24, %83 : f32
    %cst_25 = arith.constant 1.000000e+00 : f32
    %85 = arith.maximumf %11, %cst_25 : f32
    %86 = arith.divf %84, %85 : f32
    %cst_26 = arith.constant 1.000000e+02 : f32
    %87 = arith.subf %cst_26, %86 : f32
    %88 = arith.cmpf oge, %46, %42 : vector<16x1xf32>
    %89 = arith.extui %88 : vector<16x1xi1> to vector<16x1xi32>
    %90 = arith.sitofp %89 : vector<16x1xi32> to vector<16x1xf32>
    %91 = tpu.iota {dimensions = array<i32: 0>} : vector<16x2xi32>
    %92 = tpu.iota {dimensions = array<i32: 1>} : vector<16x2xi32>
    %c8_i32 = arith.constant 8 : i32
    %93 = vector.broadcast %c8_i32 : i32 to vector<16x2xi32>
    %94 = arith.muli %92, %93 : vector<16x2xi32>
    %95 = arith.cmpi sge, %91, %94 : vector<16x2xi32>
    %c1_i32 = arith.constant 1 : i32
    %96 = vector.broadcast %c1_i32 : i32 to vector<16x2xi32>
    %97 = arith.addi %92, %96 : vector<16x2xi32>
    %c8_i32_27 = arith.constant 8 : i32
    %98 = vector.broadcast %c8_i32_27 : i32 to vector<16x2xi32>
    %99 = arith.muli %97, %98 : vector<16x2xi32>
    %100 = arith.cmpi slt, %91, %99 : vector<16x2xi32>
    %101 = arith.andi %95, %100 : vector<16x2xi1>
    %cst_28 = arith.constant 0.000000e+00 : f32
    %102 = vector.shape_cast %90 : vector<16x1xf32> to vector<16x1xf32>
    %103 = vector.broadcast %102 : vector<16x1xf32> to vector<16x2xf32>
    %104 = vector.broadcast %cst_28 : f32 to vector<16x2xf32>
    %105 = arith.select %101, %103, %104 : vector<16x2xi1>, vector<16x2xf32>
    %cst_29 = arith.constant dense<0.000000e+00> : vector<2xf32>
    %106 = vector.multi_reduction <add>, %105, %cst_29 [0] : vector<16x2xf32> to vector<2xf32>
    %107 = vector.shape_cast %106 : vector<2xf32> to vector<1x2xf32>
    %108 = vector.extract_strided_slice %3 {offsets = [0, 0], sizes = [1, 2], strides = [1, 1]} : vector<1x128xi32> to vector<1x2xi32>
    %109 = arith.sitofp %108 : vector<1x2xi32> to vector<1x2xf32>
    %110 = arith.subf %107, %109 : vector<1x2xf32>
    %111 = math.absf %110 : vector<1x2xf32>
    %112 = vector.shape_cast %111 : vector<1x2xf32> to vector<1x1x2xf32>
    %cst_30 = arith.constant dense<0.000000e+00> : vector<1xf32>
    %113 = vector.multi_reduction <add>, %112, %cst_30 [1, 2] : vector<1x1x2xf32> to vector<1xf32>
    %114 = vector.shape_cast %113 : vector<1xf32> to vector<1x1x1xf32>
    %115 = vector.extract %114[0, 0, 0] : f32 from vector<1x1x1xf32>
    %cst_31 = arith.constant 2.000000e+00 : f32
    %116 = arith.divf %115, %cst_31 : f32
    %c0_32 = arith.constant 0 : index
    %c0_33 = arith.constant 0 : index
    %117 = vector.load %arg3[%c0_32, %c0_33] : memref<16x6xf32, #tpu.memory_space<vmem>>, vector<16x6xf32>
    %118 = math.absf %117 : vector<16x6xf32>
    %cst_34 = arith.constant 0.000000e+00 : f32
    %119 = vector.broadcast %cst_34 : f32 to vector<16x6xf32>
    %120 = arith.subf %119, %118 : vector<16x6xf32>
    %121 = math.exp %120 : vector<16x6xf32>
    %cst_35 = arith.constant 1.000000e+00 : f32
    %122 = vector.broadcast %cst_35 : f32 to vector<16x6xf32>
    %123 = arith.addf %122, %121 : vector<16x6xf32>
    %124 = math.log %123 : vector<16x6xf32>
    %cst_36 = arith.constant 0.000000e+00 : f32
    %125 = vector.broadcast %cst_36 : f32 to vector<16x6xf32>
    %126 = arith.subf %125, %117 : vector<16x6xf32>
    %cst_37 = arith.constant 0.000000e+00 : f32
    %127 = vector.broadcast %cst_37 : f32 to vector<16x6xf32>
    %128 = arith.minimumf %126, %127 : vector<16x6xf32>
    %129 = arith.subf %128, %124 : vector<16x6xf32>
    %cst_38 = arith.constant 0.000000e+00 : f32
    %130 = vector.broadcast %cst_38 : f32 to vector<16x6xf32>
    %131 = arith.minimumf %117, %130 : vector<16x6xf32>
    %132 = arith.subf %131, %124 : vector<16x6xf32>
    %133 = math.exp %132 : vector<16x6xf32>
    %cst_39 = arith.constant 5.000000e-01 : f32
    %134 = vector.broadcast %cst_39 : f32 to vector<16x6xf32>
    %135 = arith.mulf %134, %129 : vector<16x6xf32>
    %136 = arith.mulf %135, %133 : vector<16x6xf32>
    %137 = arith.mulf %136, %133 : vector<16x6xf32>
    %138 = vector.shape_cast %137 : vector<16x6xf32> to vector<1x16x6xf32>
    %cst_40 = arith.constant dense<0.000000e+00> : vector<1xf32>
    %139 = vector.multi_reduction <add>, %138, %cst_40 [1, 2] : vector<1x16x6xf32> to vector<1xf32>
    %140 = vector.shape_cast %139 : vector<1xf32> to vector<1x1x1xf32>
    %141 = vector.extract %140[0, 0, 0] : f32 from vector<1x1x1xf32>
    %cst_41 = arith.constant dense<0.000000e+00> : vector<128x6xf32>
    %142 = tpu.matmul %18, %117, %cst_41 {dimension_numbers = #tpu.dot_dimension_numbers<[0], [0], [1], [1], [0, 1, 1, 1], [], []>} : vector<16x128xf32>, vector<16x6xf32>, vector<128x6xf32> -> vector<128x6xf32>
    %c0_42 = arith.constant 0 : index
    %c0_43 = arith.constant 0 : index
    %143 = vector.load %arg4[%c0_42, %c0_43] : memref<128x6xf32, #tpu.memory_space<vmem>>, vector<128x6xf32>
    %144 = math.absf %142 : vector<128x6xf32>
    %cst_44 = arith.constant 0.000000e+00 : f32
    %145 = vector.broadcast %cst_44 : f32 to vector<128x6xf32>
    %146 = arith.subf %145, %144 : vector<128x6xf32>
    %147 = math.exp %146 : vector<128x6xf32>
    %cst_45 = arith.constant 1.000000e+00 : f32
    %148 = vector.broadcast %cst_45 : f32 to vector<128x6xf32>
    %149 = arith.addf %148, %147 : vector<128x6xf32>
    %150 = math.log %149 : vector<128x6xf32>
    %cst_46 = arith.constant 0.000000e+00 : f32
    %151 = vector.broadcast %cst_46 : f32 to vector<128x6xf32>
    %152 = arith.minimumf %142, %151 : vector<128x6xf32>
    %153 = arith.subf %152, %150 : vector<128x6xf32>
    %cst_47 = arith.constant 0.000000e+00 : f32
    %154 = vector.broadcast %cst_47 : f32 to vector<128x6xf32>
    %155 = arith.subf %154, %142 : vector<128x6xf32>
    %cst_48 = arith.constant 0.000000e+00 : f32
    %156 = vector.broadcast %cst_48 : f32 to vector<128x6xf32>
    %157 = arith.minimumf %155, %156 : vector<128x6xf32>
    %158 = arith.subf %157, %150 : vector<128x6xf32>
    %159 = math.exp %153 : vector<128x6xf32>
    %cst_49 = arith.constant 1.000000e+00 : f32
    %160 = vector.broadcast %cst_49 : f32 to vector<128x6xf32>
    %161 = arith.cmpf oeq, %143, %160 : vector<128x6xf32>
    %cst_50 = arith.constant 5.000000e-01 : f32
    %162 = vector.broadcast %cst_50 : f32 to vector<128x6xf32>
    %163 = arith.mulf %162, %153 : vector<128x6xf32>
    %cst_51 = arith.constant 1.000000e+00 : f32
    %164 = vector.broadcast %cst_51 : f32 to vector<128x6xf32>
    %165 = arith.subf %164, %159 : vector<128x6xf32>
    %166 = arith.mulf %165, %165 : vector<128x6xf32>
    %167 = arith.mulf %163, %166 : vector<128x6xf32>
    %cst_52 = arith.constant 5.000000e-01 : f32
    %168 = vector.broadcast %cst_52 : f32 to vector<128x6xf32>
    %169 = arith.mulf %168, %158 : vector<128x6xf32>
    %170 = arith.mulf %169, %159 : vector<128x6xf32>
    %171 = arith.mulf %170, %159 : vector<128x6xf32>
    %172 = arith.subf %167, %171 : vector<128x6xf32>
    %cst_53 = arith.constant 0.000000e+00 : f32
    %173 = vector.broadcast %cst_53 : f32 to vector<128x6xf32>
    %174 = arith.select %161, %172, %173 : vector<128x6xi1>, vector<128x6xf32>
    %175 = vector.shape_cast %174 : vector<128x6xf32> to vector<1x128x6xf32>
    %cst_54 = arith.constant dense<0.000000e+00> : vector<1xf32>
    %176 = vector.multi_reduction <add>, %175, %cst_54 [1, 2] : vector<1x128x6xf32> to vector<1xf32>
    %177 = vector.shape_cast %176 : vector<1xf32> to vector<1x1x1xf32>
    %178 = vector.extract %177[0, 0, 0] : f32 from vector<1x1x1xf32>
    %179 = arith.addf %141, %178 : f32
    %180 = arith.extui %161 : vector<128x6xi1> to vector<128x6xi32>
    %181 = arith.sitofp %180 : vector<128x6xi32> to vector<128x6xf32>
    %182 = vector.shape_cast %181 : vector<128x6xf32> to vector<1x128x6xf32>
    %cst_55 = arith.constant dense<0.000000e+00> : vector<1xf32>
    %183 = vector.multi_reduction <add>, %182, %cst_55 [1, 2] : vector<1x128x6xf32> to vector<1xf32>
    %184 = vector.shape_cast %183 : vector<1xf32> to vector<1x1x1xf32>
    %185 = vector.extract %184[0, 0, 0] : f32 from vector<1x1x1xf32>
    %cst_56 = arith.constant 0.000000e+00 : f32
    %186 = arith.cmpf oeq, %185, %cst_56 : f32
    %cst_57 = arith.constant 0.000000e+00 : f32
    %187 = arith.subf %cst_57, %179 : f32
    %cst_58 = arith.constant 0.000000e+00 : f32
    %188 = arith.subf %cst_58, %179 : f32
    %cst_59 = arith.constant 1.000000e+00 : f32
    %189 = arith.maximumf %185, %cst_59 : f32
    %190 = arith.divf %188, %189 : f32
    %191 = arith.select %186, %187, %190 : f32
    %c0_60 = arith.constant 0 : index
    %c0_61 = arith.constant 0 : index
    %192 = vector.load %arg5[%c0_60, %c0_61] : memref<16x8xf32, #tpu.memory_space<vmem>>, vector<16x8xf32>
    %cst_62 = arith.constant dense<0.000000e+00> : vector<8x128xf32>
    %193 = tpu.matmul %192, %18, %cst_62 {dimension_numbers = #tpu.dot_dimension_numbers<[0], [0], [1], [1], [0, 1, 1, 1], [], []>} : vector<16x8xf32>, vector<16x128xf32>, vector<8x128xf32> -> vector<8x128xf32>
    %c0_63 = arith.constant 0 : index
    %c0_64 = arith.constant 0 : index
    %194 = vector.load %arg6[%c0_63, %c0_64] : memref<8x128xf32, #tpu.memory_space<vmem>>, vector<8x128xf32>
    %195 = vector.extract_strided_slice %194 {offsets = [4, 0], sizes = [4, 128], strides = [1, 1]} : vector<8x128xf32> to vector<4x128xf32>
    %196 = math.absf %195 : vector<4x128xf32>
    %cst_65 = arith.constant dense<0.000000e+00> : vector<128xf32>
    %197 = vector.multi_reduction <add>, %196, %cst_65 [0] : vector<4x128xf32> to vector<128xf32>
    %198 = vector.shape_cast %197 : vector<128xf32> to vector<1x128xf32>
    %cst_66 = arith.constant 0.000000e+00 : f32
    %199 = vector.broadcast %cst_66 : f32 to vector<1x128xf32>
    %200 = arith.cmpf ogt, %198, %199 : vector<1x128xf32>
    %201 = arith.andi %5, %200 : vector<1x128xi1>
    %202 = vector.extract_strided_slice %193 {offsets = [0, 0], sizes = [4, 128], strides = [1, 1]} : vector<8x128xf32> to vector<4x128xf32>
    %203 = vector.extract_strided_slice %194 {offsets = [0, 0], sizes = [4, 128], strides = [1, 1]} : vector<8x128xf32> to vector<4x128xf32>
    %204 = arith.subf %202, %203 : vector<4x128xf32>
    %205 = math.absf %204 : vector<4x128xf32>
    %cst_67 = arith.constant 0.000000e+00 : f32
    %206 = vector.shape_cast %5 : vector<1x128xi1> to vector<1x128xi1>
    %207 = vector.broadcast %206 : vector<1x128xi1> to vector<4x128xi1>
    %208 = vector.broadcast %cst_67 : f32 to vector<4x128xf32>
    %209 = arith.select %207, %205, %208 : vector<4x128xi1>, vector<4x128xf32>
    %210 = vector.shape_cast %209 : vector<4x128xf32> to vector<1x4x128xf32>
    %cst_68 = arith.constant dense<0.000000e+00> : vector<1xf32>
    %211 = vector.multi_reduction <add>, %210, %cst_68 [1, 2] : vector<1x4x128xf32> to vector<1xf32>
    %212 = vector.shape_cast %211 : vector<1xf32> to vector<1x1x1xf32>
    %213 = vector.extract %212[0, 0, 0] : f32 from vector<1x1x1xf32>
    %214 = vector.extract_strided_slice %193 {offsets = [4, 0], sizes = [4, 128], strides = [1, 1]} : vector<8x128xf32> to vector<4x128xf32>
    %215 = vector.extract_strided_slice %194 {offsets = [4, 0], sizes = [4, 128], strides = [1, 1]} : vector<8x128xf32> to vector<4x128xf32>
    %216 = arith.subf %214, %215 : vector<4x128xf32>
    %217 = math.absf %216 : vector<4x128xf32>
    %cst_69 = arith.constant 0.000000e+00 : f32
    %218 = vector.shape_cast %201 : vector<1x128xi1> to vector<1x128xi1>
    %219 = vector.broadcast %218 : vector<1x128xi1> to vector<4x128xi1>
    %220 = vector.broadcast %cst_69 : f32 to vector<4x128xf32>
    %221 = arith.select %219, %217, %220 : vector<4x128xi1>, vector<4x128xf32>
    %222 = vector.shape_cast %221 : vector<4x128xf32> to vector<1x4x128xf32>
    %cst_70 = arith.constant dense<0.000000e+00> : vector<1xf32>
    %223 = vector.multi_reduction <add>, %222, %cst_70 [1, 2] : vector<1x4x128xf32> to vector<1xf32>
    %224 = vector.shape_cast %223 : vector<1xf32> to vector<1x1x1xf32>
    %225 = vector.extract %224[0, 0, 0] : f32 from vector<1x1x1xf32>
    %cst_71 = arith.constant 1.000000e+00 : f32
    %cst_72 = arith.constant 0.000000e+00 : f32
    %226 = vector.broadcast %cst_71 : f32 to vector<1x128xf32>
    %227 = vector.broadcast %cst_72 : f32 to vector<1x128xf32>
    %228 = arith.select %201, %226, %227 : vector<1x128xi1>, vector<1x128xf32>
    %229 = vector.shape_cast %228 : vector<1x128xf32> to vector<1x1x128xf32>
    %cst_73 = arith.constant dense<0.000000e+00> : vector<1xf32>
    %230 = vector.multi_reduction <add>, %229, %cst_73 [1, 2] : vector<1x1x128xf32> to vector<1xf32>
    %231 = vector.shape_cast %230 : vector<1xf32> to vector<1x1x1xf32>
    %232 = vector.extract %231[0, 0, 0] : f32 from vector<1x1x1xf32>
    %233 = vector.extract_strided_slice %193 {offsets = [0, 0], sizes = [1, 128], strides = [1, 1]} : vector<8x128xf32> to vector<1x128xf32>
    %234 = vector.extract_strided_slice %193 {offsets = [1, 0], sizes = [1, 128], strides = [1, 1]} : vector<8x128xf32> to vector<1x128xf32>
    %235 = vector.extract_strided_slice %193 {offsets = [2, 0], sizes = [1, 128], strides = [1, 1]} : vector<8x128xf32> to vector<1x128xf32>
    %236 = vector.extract_strided_slice %193 {offsets = [3, 0], sizes = [1, 128], strides = [1, 1]} : vector<8x128xf32> to vector<1x128xf32>
    %cst_74 = arith.constant 5.000000e-01 : f32
    %237 = vector.broadcast %cst_74 : f32 to vector<1x128xf32>
    %238 = arith.mulf %237, %235 : vector<1x128xf32>
    %239 = arith.subf %233, %238 : vector<1x128xf32>
    %cst_75 = arith.constant 5.000000e-01 : f32
    %240 = vector.broadcast %cst_75 : f32 to vector<1x128xf32>
    %241 = arith.mulf %240, %236 : vector<1x128xf32>
    %242 = arith.subf %234, %241 : vector<1x128xf32>
    %cst_76 = arith.constant 5.000000e-01 : f32
    %243 = vector.broadcast %cst_76 : f32 to vector<1x128xf32>
    %244 = arith.mulf %243, %235 : vector<1x128xf32>
    %245 = arith.addf %233, %244 : vector<1x128xf32>
    %cst_77 = arith.constant 5.000000e-01 : f32
    %246 = vector.broadcast %cst_77 : f32 to vector<1x128xf32>
    %247 = arith.mulf %246, %236 : vector<1x128xf32>
    %248 = arith.addf %234, %247 : vector<1x128xf32>
    %249 = vector.extract_strided_slice %194 {offsets = [0, 0], sizes = [1, 128], strides = [1, 1]} : vector<8x128xf32> to vector<1x128xf32>
    %250 = vector.extract_strided_slice %194 {offsets = [1, 0], sizes = [1, 128], strides = [1, 1]} : vector<8x128xf32> to vector<1x128xf32>
    %251 = vector.extract_strided_slice %194 {offsets = [2, 0], sizes = [1, 128], strides = [1, 1]} : vector<8x128xf32> to vector<1x128xf32>
    %252 = vector.extract_strided_slice %194 {offsets = [3, 0], sizes = [1, 128], strides = [1, 1]} : vector<8x128xf32> to vector<1x128xf32>
    %cst_78 = arith.constant 5.000000e-01 : f32
    %253 = vector.broadcast %cst_78 : f32 to vector<1x128xf32>
    %254 = arith.mulf %253, %251 : vector<1x128xf32>
    %255 = arith.subf %249, %254 : vector<1x128xf32>
    %cst_79 = arith.constant 5.000000e-01 : f32
    %256 = vector.broadcast %cst_79 : f32 to vector<1x128xf32>
    %257 = arith.mulf %256, %252 : vector<1x128xf32>
    %258 = arith.subf %250, %257 : vector<1x128xf32>
    %cst_80 = arith.constant 5.000000e-01 : f32
    %259 = vector.broadcast %cst_80 : f32 to vector<1x128xf32>
    %260 = arith.mulf %259, %251 : vector<1x128xf32>
    %261 = arith.addf %249, %260 : vector<1x128xf32>
    %cst_81 = arith.constant 5.000000e-01 : f32
    %262 = vector.broadcast %cst_81 : f32 to vector<1x128xf32>
    %263 = arith.mulf %262, %252 : vector<1x128xf32>
    %264 = arith.addf %250, %263 : vector<1x128xf32>
    %265 = arith.subf %245, %239 : vector<1x128xf32>
    %266 = arith.subf %248, %242 : vector<1x128xf32>
    %267 = arith.mulf %265, %266 : vector<1x128xf32>
    %268 = arith.subf %261, %255 : vector<1x128xf32>
    %269 = arith.subf %264, %258 : vector<1x128xf32>
    %270 = arith.mulf %268, %269 : vector<1x128xf32>
    %271 = arith.minimumf %245, %261 : vector<1x128xf32>
    %272 = arith.maximumf %239, %255 : vector<1x128xf32>
    %273 = arith.subf %271, %272 : vector<1x128xf32>
    %cst_82 = arith.constant 0.000000e+00 : f32
    %274 = vector.broadcast %cst_82 : f32 to vector<1x128xf32>
    %275 = arith.maximumf %273, %274 : vector<1x128xf32>
    %276 = arith.minimumf %248, %264 : vector<1x128xf32>
    %277 = arith.maximumf %242, %258 : vector<1x128xf32>
    %278 = arith.subf %276, %277 : vector<1x128xf32>
    %cst_83 = arith.constant 0.000000e+00 : f32
    %279 = vector.broadcast %cst_83 : f32 to vector<1x128xf32>
    %280 = arith.maximumf %278, %279 : vector<1x128xf32>
    %281 = arith.mulf %275, %280 : vector<1x128xf32>
    %282 = arith.addf %267, %270 : vector<1x128xf32>
    %283 = arith.subf %282, %281 : vector<1x128xf32>
    %cst_84 = arith.constant 1.000000e-07 : f32
    %284 = vector.broadcast %cst_84 : f32 to vector<1x128xf32>
    %285 = arith.addf %283, %284 : vector<1x128xf32>
    %286 = tpu.reciprocal %285 {approx = true} : vector<1x128xf32> -> vector<1x128xf32>
    %287 = arith.mulf %281, %286 : vector<1x128xf32>
    %288 = arith.maximumf %245, %261 : vector<1x128xf32>
    %289 = arith.minimumf %239, %255 : vector<1x128xf32>
    %290 = arith.subf %288, %289 : vector<1x128xf32>
    %291 = arith.maximumf %248, %264 : vector<1x128xf32>
    %292 = arith.minimumf %242, %258 : vector<1x128xf32>
    %293 = arith.subf %291, %292 : vector<1x128xf32>
    %294 = arith.mulf %290, %293 : vector<1x128xf32>
    %295 = arith.subf %294, %283 : vector<1x128xf32>
    %cst_85 = arith.constant 1.000000e-07 : f32
    %296 = vector.broadcast %cst_85 : f32 to vector<1x128xf32>
    %297 = arith.addf %294, %296 : vector<1x128xf32>
    %298 = tpu.reciprocal %297 {approx = true} : vector<1x128xf32> -> vector<1x128xf32>
    %299 = arith.mulf %295, %298 : vector<1x128xf32>
    %300 = arith.subf %287, %299 : vector<1x128xf32>
    %cst_86 = arith.constant 1.000000e+00 : f32
    %301 = vector.broadcast %cst_86 : f32 to vector<1x128xf32>
    %302 = arith.subf %301, %300 : vector<1x128xf32>
    %cst_87 = arith.constant 0.000000e+00 : f32
    %303 = vector.broadcast %cst_87 : f32 to vector<1x128xf32>
    %304 = arith.select %5, %302, %303 : vector<1x128xi1>, vector<1x128xf32>
    %305 = vector.shape_cast %304 : vector<1x128xf32> to vector<1x1x128xf32>
    %cst_88 = arith.constant dense<0.000000e+00> : vector<1xf32>
    %306 = vector.multi_reduction <add>, %305, %cst_88 [1, 2] : vector<1x1x128xf32> to vector<1xf32>
    %307 = vector.shape_cast %306 : vector<1xf32> to vector<1x1x1xf32>
    %308 = vector.extract %307[0, 0, 0] : f32 from vector<1x1x1xf32>
    %309 = vector.extract_strided_slice %193 {offsets = [4, 0], sizes = [1, 128], strides = [1, 1]} : vector<8x128xf32> to vector<1x128xf32>
    %310 = vector.extract_strided_slice %193 {offsets = [5, 0], sizes = [1, 128], strides = [1, 1]} : vector<8x128xf32> to vector<1x128xf32>
    %311 = vector.extract_strided_slice %193 {offsets = [6, 0], sizes = [1, 128], strides = [1, 1]} : vector<8x128xf32> to vector<1x128xf32>
    %312 = vector.extract_strided_slice %193 {offsets = [7, 0], sizes = [1, 128], strides = [1, 1]} : vector<8x128xf32> to vector<1x128xf32>
    %cst_89 = arith.constant 5.000000e-01 : f32
    %313 = vector.broadcast %cst_89 : f32 to vector<1x128xf32>
    %314 = arith.mulf %313, %311 : vector<1x128xf32>
    %315 = arith.subf %309, %314 : vector<1x128xf32>
    %cst_90 = arith.constant 5.000000e-01 : f32
    %316 = vector.broadcast %cst_90 : f32 to vector<1x128xf32>
    %317 = arith.mulf %316, %312 : vector<1x128xf32>
    %318 = arith.subf %310, %317 : vector<1x128xf32>
    %cst_91 = arith.constant 5.000000e-01 : f32
    %319 = vector.broadcast %cst_91 : f32 to vector<1x128xf32>
    %320 = arith.mulf %319, %311 : vector<1x128xf32>
    %321 = arith.addf %309, %320 : vector<1x128xf32>
    %cst_92 = arith.constant 5.000000e-01 : f32
    %322 = vector.broadcast %cst_92 : f32 to vector<1x128xf32>
    %323 = arith.mulf %322, %312 : vector<1x128xf32>
    %324 = arith.addf %310, %323 : vector<1x128xf32>
    %325 = vector.extract_strided_slice %194 {offsets = [4, 0], sizes = [1, 128], strides = [1, 1]} : vector<8x128xf32> to vector<1x128xf32>
    %326 = vector.extract_strided_slice %194 {offsets = [5, 0], sizes = [1, 128], strides = [1, 1]} : vector<8x128xf32> to vector<1x128xf32>
    %327 = vector.extract_strided_slice %194 {offsets = [6, 0], sizes = [1, 128], strides = [1, 1]} : vector<8x128xf32> to vector<1x128xf32>
    %328 = vector.extract_strided_slice %194 {offsets = [7, 0], sizes = [1, 128], strides = [1, 1]} : vector<8x128xf32> to vector<1x128xf32>
    %cst_93 = arith.constant 5.000000e-01 : f32
    %329 = vector.broadcast %cst_93 : f32 to vector<1x128xf32>
    %330 = arith.mulf %329, %327 : vector<1x128xf32>
    %331 = arith.subf %325, %330 : vector<1x128xf32>
    %cst_94 = arith.constant 5.000000e-01 : f32
    %332 = vector.broadcast %cst_94 : f32 to vector<1x128xf32>
    %333 = arith.mulf %332, %328 : vector<1x128xf32>
    %334 = arith.subf %326, %333 : vector<1x128xf32>
    %cst_95 = arith.constant 5.000000e-01 : f32
    %335 = vector.broadcast %cst_95 : f32 to vector<1x128xf32>
    %336 = arith.mulf %335, %327 : vector<1x128xf32>
    %337 = arith.addf %325, %336 : vector<1x128xf32>
    %cst_96 = arith.constant 5.000000e-01 : f32
    %338 = vector.broadcast %cst_96 : f32 to vector<1x128xf32>
    %339 = arith.mulf %338, %328 : vector<1x128xf32>
    %340 = arith.addf %326, %339 : vector<1x128xf32>
    %341 = arith.subf %321, %315 : vector<1x128xf32>
    %342 = arith.subf %324, %318 : vector<1x128xf32>
    %343 = arith.mulf %341, %342 : vector<1x128xf32>
    %344 = arith.subf %337, %331 : vector<1x128xf32>
    %345 = arith.subf %340, %334 : vector<1x128xf32>
    %346 = arith.mulf %344, %345 : vector<1x128xf32>
    %347 = arith.minimumf %321, %337 : vector<1x128xf32>
    %348 = arith.maximumf %315, %331 : vector<1x128xf32>
    %349 = arith.subf %347, %348 : vector<1x128xf32>
    %cst_97 = arith.constant 0.000000e+00 : f32
    %350 = vector.broadcast %cst_97 : f32 to vector<1x128xf32>
    %351 = arith.maximumf %349, %350 : vector<1x128xf32>
    %352 = arith.minimumf %324, %340 : vector<1x128xf32>
    %353 = arith.maximumf %318, %334 : vector<1x128xf32>
    %354 = arith.subf %352, %353 : vector<1x128xf32>
    %cst_98 = arith.constant 0.000000e+00 : f32
    %355 = vector.broadcast %cst_98 : f32 to vector<1x128xf32>
    %356 = arith.maximumf %354, %355 : vector<1x128xf32>
    %357 = arith.mulf %351, %356 : vector<1x128xf32>
    %358 = arith.addf %343, %346 : vector<1x128xf32>
    %359 = arith.subf %358, %357 : vector<1x128xf32>
    %cst_99 = arith.constant 1.000000e-07 : f32
    %360 = vector.broadcast %cst_99 : f32 to vector<1x128xf32>
    %361 = arith.addf %359, %360 : vector<1x128xf32>
    %362 = tpu.reciprocal %361 {approx = true} : vector<1x128xf32> -> vector<1x128xf32>
    %363 = arith.mulf %357, %362 : vector<1x128xf32>
    %364 = arith.maximumf %321, %337 : vector<1x128xf32>
    %365 = arith.minimumf %315, %331 : vector<1x128xf32>
    %366 = arith.subf %364, %365 : vector<1x128xf32>
    %367 = arith.maximumf %324, %340 : vector<1x128xf32>
    %368 = arith.minimumf %318, %334 : vector<1x128xf32>
    %369 = arith.subf %367, %368 : vector<1x128xf32>
    %370 = arith.mulf %366, %369 : vector<1x128xf32>
    %371 = arith.subf %370, %359 : vector<1x128xf32>
    %cst_100 = arith.constant 1.000000e-07 : f32
    %372 = vector.broadcast %cst_100 : f32 to vector<1x128xf32>
    %373 = arith.addf %370, %372 : vector<1x128xf32>
    %374 = tpu.reciprocal %373 {approx = true} : vector<1x128xf32> -> vector<1x128xf32>
    %375 = arith.mulf %371, %374 : vector<1x128xf32>
    %376 = arith.subf %363, %375 : vector<1x128xf32>
    %cst_101 = arith.constant 1.000000e+00 : f32
    %377 = vector.broadcast %cst_101 : f32 to vector<1x128xf32>
    %378 = arith.subf %377, %376 : vector<1x128xf32>
    %cst_102 = arith.constant 0.000000e+00 : f32
    %379 = vector.broadcast %cst_102 : f32 to vector<1x128xf32>
    %380 = arith.select %201, %378, %379 : vector<1x128xi1>, vector<1x128xf32>
    %381 = vector.shape_cast %380 : vector<1x128xf32> to vector<1x1x128xf32>
    %cst_103 = arith.constant dense<0.000000e+00> : vector<1xf32>
    %382 = vector.multi_reduction <add>, %381, %cst_103 [1, 2] : vector<1x1x128xf32> to vector<1xf32>
    %383 = vector.shape_cast %382 : vector<1xf32> to vector<1x1x1xf32>
    %384 = vector.extract %383[0, 0, 0] : f32 from vector<1x1x1xf32>
    %385 = arith.mulf %213, %13 : f32
    %cst_104 = arith.constant 9.99999974E-5 : f32
    %386 = arith.addf %232, %cst_104 : f32
    %387 = arith.divf %225, %386 : f32
    %388 = arith.mulf %308, %13 : f32
    %cst_105 = arith.constant 9.99999974E-5 : f32
    %389 = arith.addf %232, %cst_105 : f32
    %390 = arith.divf %384, %389 : f32
    %391 = tpu.iota {dimensions = array<i32: 1>} : vector<1x128xi32>
    %cst_106 = arith.constant 0.000000e+00 : f32
    %392 = vector.broadcast %cst_106 : f32 to vector<1x128xf32>
    %c0_i32_107 = arith.constant 0 : i32
    %393 = vector.broadcast %c0_i32_107 : i32 to vector<1x128xi32>
    %394 = arith.cmpi eq, %391, %393 : vector<1x128xi32>
    %395 = vector.broadcast %74 : f32 to vector<1x128xf32>
    %396 = arith.select %394, %395, %392 : vector<1x128xi1>, vector<1x128xf32>
    %c1_i32_108 = arith.constant 1 : i32
    %397 = vector.broadcast %c1_i32_108 : i32 to vector<1x128xi32>
    %398 = arith.cmpi eq, %391, %397 : vector<1x128xi32>
    %399 = vector.broadcast %87 : f32 to vector<1x128xf32>
    %400 = arith.select %398, %399, %396 : vector<1x128xi1>, vector<1x128xf32>
    %c2_i32 = arith.constant 2 : i32
    %401 = vector.broadcast %c2_i32 : i32 to vector<1x128xi32>
    %402 = arith.cmpi eq, %391, %401 : vector<1x128xi32>
    %403 = vector.broadcast %116 : f32 to vector<1x128xf32>
    %404 = arith.select %402, %403, %400 : vector<1x128xi1>, vector<1x128xf32>
    %c3_i32 = arith.constant 3 : i32
    %405 = vector.broadcast %c3_i32 : i32 to vector<1x128xi32>
    %406 = arith.cmpi eq, %391, %405 : vector<1x128xi32>
    %407 = vector.broadcast %191 : f32 to vector<1x128xf32>
    %408 = arith.select %406, %407, %404 : vector<1x128xi1>, vector<1x128xf32>
    %c4_i32_109 = arith.constant 4 : i32
    %409 = vector.broadcast %c4_i32_109 : i32 to vector<1x128xi32>
    %410 = arith.cmpi eq, %391, %409 : vector<1x128xi32>
    %411 = vector.broadcast %385 : f32 to vector<1x128xf32>
    %412 = arith.select %410, %411, %408 : vector<1x128xi1>, vector<1x128xf32>
    %c5_i32 = arith.constant 5 : i32
    %413 = vector.broadcast %c5_i32 : i32 to vector<1x128xi32>
    %414 = arith.cmpi eq, %391, %413 : vector<1x128xi32>
    %415 = vector.broadcast %387 : f32 to vector<1x128xf32>
    %416 = arith.select %414, %415, %412 : vector<1x128xi1>, vector<1x128xf32>
    %c6_i32 = arith.constant 6 : i32
    %417 = vector.broadcast %c6_i32 : i32 to vector<1x128xi32>
    %418 = arith.cmpi eq, %391, %417 : vector<1x128xi32>
    %419 = vector.broadcast %388 : f32 to vector<1x128xf32>
    %420 = arith.select %418, %419, %416 : vector<1x128xi1>, vector<1x128xf32>
    %c7_i32 = arith.constant 7 : i32
    %421 = vector.broadcast %c7_i32 : i32 to vector<1x128xi32>
    %422 = arith.cmpi eq, %391, %421 : vector<1x128xi32>
    %423 = vector.broadcast %390 : f32 to vector<1x128xf32>
    %424 = arith.select %422, %423, %420 : vector<1x128xi1>, vector<1x128xf32>
    %c0_110 = arith.constant 0 : index
    %c0_111 = arith.constant 0 : index
    %425 = vector.load %arg7[%c0_110, %c0_111] : memref<1x128xf32, #tpu.memory_space<vmem>>, vector<1x128xf32>
    tpu.vector_store %arg7[%c0_110, %c0_111], %424 {strides = array<i32>} : memref<1x128xf32, #tpu.memory_space<vmem>>, vector<1x128xf32>,
    return
  }
}

</mosaic_0001>

<llo_original>
// kernel: tpu_custom_call.1
$region0: #{tpu_custom_call.1}
  #allocation0 [shape = 'u32[]', space=smem, size = 0x4, offset = 0x4, fixed_abs, tag = 'smem constant byte address 0x4 - core index']
  #allocation1 [shape = 'u32[144,128]{1,0:T(1,128)}', space=vmem, size = 0x12000, scoped, tag = 'internal scratch']
  #allocation2 [shape = 'f32[1]{0:T(128)S(6)}', space=smem, size = 0x200, scoped, tag = 'scoped memory for tpu_custom_call.1']
  %s0 = inlined_call_operand.<no memory space> [shape: f32[1], index: 0, kind: input, shape index: {}]
  %s1 = inlined_call_operand.vmem [shape: s32[3,128], index: 1, kind: input, shape index: {}]
  %s2 = inlined_call_operand.vmem [shape: f32[16,5], index: 2, kind: input, shape index: {}]
  %s3 = inlined_call_operand.vmem [shape: f32[16,6], index: 3, kind: input, shape index: {}]
  %s4 = inlined_call_operand.vmem [shape: f32[128,6], index: 4, kind: input, shape index: {}]
  %s5 = inlined_call_operand.vmem [shape: f32[16,8], index: 5, kind: input, shape index: {}]
  %s6 = inlined_call_operand.vmem [shape: f32[8,128], index: 6, kind: input, shape index: {}]
  %s7 = inlined_call_operand.hbm [shape: f32[1,128], index: 7, kind: output, shape index: {}]
  %s8 = sld [smem:[#allocation0]]
  $region38: #{tpu_custom_call.1} parent=0
    _
  %s10 = ssub.s32 1, %s8
  %s11 = scalar_select 0, %s10, %s8
  %12 = sst [smem:[#allocation2]] %s0
  $region1: #{tpu_custom_call.1} parent=0
    #allocation3 [shape = 'u8[512]{0}', space=vmem, size = 0x400, scoped, tag = 'output window, operand 0, single buffered']
    #allocation4 [shape = 's32[1]{0}', space=sflag, size = 0x4, scoped, tag = 'scoped memory for tpu_custom_call.1']
    %13 = vsyncpa [#allocation4], 0
    // Predicated region
    $region2: #{tpu_custom_call.1} parent=1 // pred_check
      _
    $region3: #{tpu_custom_call.1} parent=1 // pred_check_branch
      %15 = sbr.rel (0) target = $region5
    $region4: #{tpu_custom_call.1} parent=1 // pred_region
      _
    $region5: #{tpu_custom_call.1} parent=1 // pred_fallthru
      _
    // Predicated region
    $region6: #{tpu_custom_call.1} parent=1 // pred_check
      _
    $region7: #{tpu_custom_call.1} parent=1 // pred_check_branch
      %17 = sbr.rel (0) target = $region9
    $region8: #{tpu_custom_call.1} parent=1 // pred_region
      _
    $region9: #{tpu_custom_call.1} parent=1 // pred_fallthru
      _
    // Predicated region
    $region10: #{tpu_custom_call.1} parent=1 // pred_check
      _
    $region11: #{tpu_custom_call.1} parent=1 // pred_check_branch
      %19 = sbr.rel (0) target = $region13
    $region12: #{tpu_custom_call.1} parent=1 // pred_region
      _
    $region13: #{tpu_custom_call.1} parent=1 // pred_fallthru
      _
    // Predicated region
    $region14: #{tpu_custom_call.1} parent=1 // pred_check
      _
    $region15: #{tpu_custom_call.1} parent=1 // pred_check_branch
      %21 = sbr.rel (0) target = $region17
    $region16: #{tpu_custom_call.1} parent=1 // pred_region
      _
    $region17: #{tpu_custom_call.1} parent=1 // pred_fallthru
      _
    // Predicated region
    $region18: #{tpu_custom_call.1} parent=1 // pred_check
      _
    $region19: #{tpu_custom_call.1} parent=1 // pred_check_branch
      %23 = sbr.rel (0) target = $region21
    $region20: #{tpu_custom_call.1} parent=1 // pred_region
      _
    $region21: #{tpu_custom_call.1} parent=1 // pred_fallthru
      _
    // Predicated region
    $region22: #{tpu_custom_call.1} parent=1 // pred_check
      _
    $region23: #{tpu_custom_call.1} parent=1 // pred_check_branch
      %25 = sbr.rel (0) target = $region25
    $region24: #{tpu_custom_call.1} parent=1 // pred_region
      _
    $region25: #{tpu_custom_call.1} parent=1 // pred_fallthru
      _
    // Predicated region
    $region26: #{tpu_custom_call.1} parent=1 // pred_check
      _
    $region27: #{tpu_custom_call.1} parent=1 // pred_check_branch
      %27 = sbr.rel (0) target = $region29
    $region28: #{tpu_custom_call.1} parent=1 // pred_region
      _
    $region29: #{tpu_custom_call.1} parent=1 // pred_fallthru
      _
    %v28 = vld [vmem:[%s1] sm:$0x7]
    %vm29 = vcmp.ge.s32.totalorder %v28, 0
    %v30 = vsel %vm29, 1, 0
    %v31 = vcvt.s32.f32 %v30
    %vm32 = vcmask 1040384
    %v33 = vsel %vm32, %v31, 0.0
    %34 = vadd.xlane.f32.xlu0 %v33
    %v35 = vpop.xlane.xlu0 %34
    %v36 = vrot.slane %v35, 4
    %v37 = vadd.f32 %v35, %v36
    %v38 = vrot.slane %v37, 2
    %v39 = vadd.f32 %v37, %v38
    %v40 = vrot.slane %v39, 1
    %v41 = vadd.f32 %v39, %v40
    %s42 = vtos %v41
    %s43 = sld [smem:[#allocation2]]
    %v44 = vstv %s43
    %v45 = vrcp.pop %v44
    %s46 = vtos %v45
    %v47 = vlaneseq
    %v48 = vshrl.u32 %v47, 7
    %v49 = vadd.s32 %v48, 8
    %v50 = vlaneseq
    %v51 = vshrl.u32 %v50, 7
    %v52 = vsub.s32 0, %v51
    %v53 = vrot.slane %v28, %v52
    %vm54 = vcmp.eq.s32.totalorder %v48, %v53
    %vm55 = vcmp.eq.s32.totalorder %v49, %v53
    %v56 = vsel %vm54, 1, 0
    %v57 = vsel %vm55, 1, 0
    %v58 = vcvt.s32.f32 %v56
    %v59 = vcvt.s32.f32 %v57
    %60 = vadd.xlane.f32.xlu0 %v58
    %v61 = vpop.xlane.xlu0 %60
    %62 = vadd.xlane.f32.xlu0 %v59
    %v63 = vpop.xlane.xlu0 %62
    %vm64 = vcmp.gt.f32.partialorder %v61, 0.0
    %vm65 = vcmp.gt.f32.partialorder %v63, 0.0
    %v66 = vcvt.s32.f32 %v28
    %v67 = vlaneseq
    %v68 = vshrl.u32 %v67, 7
    %v69 = vsub.s32 1, %v68
    %v70 = vrot.slane %v66, %v69
    %v71 = vsel %vm54, %v70, 0.0
    %v72 = vsel %vm55, %v70, 0.0
    %73 = vadd.xlane.f32.xlu0 %v71
    %v74 = vpop.xlane.xlu0 %73
    %75 = vadd.xlane.f32.xlu0 %v72
    %v76 = vpop.xlane.xlu0 %75
    %v77 = vsel %vm64, %v74, 4.0
    %v78 = vsel %vm65, %v76, 4.0
    %v79 = vcvt.f32.s32.to.zero.pseudo %v77
    %v80 = vcvt.f32.s32.to.zero.pseudo %v78
    %v81 = vld [vmem:[%s2] sm:$0xff]
    %v82 = vld [vmem:[%s2 + $0x8] sm:$0xff]
    %v83 = vlaneseq
    %v84 = vand.u32 %v83, 127
    %vm85 = vcmp.eq.s32.totalorder %v84, 4
    %vm86 = vcmp.eq.s32.totalorder %v84, %v79
    %vm87 = vcmp.eq.s32.totalorder %v84, %v80
    %v88 = vsel %vm85, %v81, 0.0
    %v89 = vsel %vm85, %v82, 0.0
    %vm90 = vcmask 39936
    %v91 = vsel %vm90, %v88, 0.0
    %92 = vadd.xlane.f32.xlu0 %v91
    %v93 = vpop.xlane.xlu0 %92
    %v94 = vsel %vm90, %v89, 0.0
    %95 = vadd.xlane.f32.xlu0 %v94
    %v96 = vpop.xlane.xlu0 %95
    %v97 = vsel %vm85, -1e+30, %v81
    %v98 = vsel %vm85, -1e+30, %v82
    %v99 = vsel %vm90, %v97, -inf
    %100 = vmax.xlane.f32.xlu0 %v99
    %v101 = vpop.xlane.xlu0 %100
    %v102 = vsel %vm90, %v98, -inf
    %103 = vmax.xlane.f32.xlu0 %v102
    %v104 = vpop.xlane.xlu0 %103
    %v105 = vmax.f32 %v101, %v93
    %v106 = vmax.f32 %v104, %v96
    %v107 = vsub.f32 %v81, %v105
    %v108 = vsub.f32 %v82, %v106
    %v109 = vmul.f32 %v107, 1.442695
    %v110 = vpow.pop %v109
    %v111 = vmul.f32 %v108, 1.442695
    %v112 = vpow.pop %v111
    %v113 = vsel %vm90, %v110, 0.0
    %114 = vadd.xlane.f32.xlu0 %v113
    %v115 = vpop.xlane.xlu0 %114
    %v116 = vsel %vm90, %v112, 0.0
    %117 = vadd.xlane.f32.xlu0 %v116
    %v118 = vpop.xlane.xlu0 %117
    %v119 = vlog2.pop %v115
    %v120 = vmul.f32 %v119, 0.6931472
    %v121 = vlog2.pop %v118
    %v122 = vmul.f32 %v121, 0.6931472
    %v123 = vadd.f32 %v120, %v105
    %v124 = vadd.f32 %v122, %v106
    %v125 = vsel %vm86, %v81, 0.0
    %v126 = vsel %vm87, %v82, 0.0
    %v127 = vsel %vm90, %v125, 0.0
    %128 = vadd.xlane.f32.xlu0 %v127
    %v129 = vpop.xlane.xlu0 %128
    %v130 = vsel %vm90, %v126, 0.0
    %131 = vadd.xlane.f32.xlu0 %v130
    %v132 = vpop.xlane.xlu0 %131
    %vm133 = vcmp.eq.s32.totalorder %v79, 4
    %vm134 = vcmp.eq.s32.totalorder %v80, 4
    %v135 = vsel %vm133, 0.1, 1.0
    %v136 = vsel %vm134, 0.1, 1.0
    %v137 = vsub.f32 %v123, %v129
    %v138 = vsub.f32 %v124, %v132
    %v139 = vmul.f32 %v135, %v137
    %v140 = vmul.f32 %v136, %v138
    %vm141 = vcmask 7168
    %v142 = vsel %vm141, %v139, 0.0
    %v143 = vsel %vm141, %v140, 0.0
    %v144 = vadd.f32 %v142, %v143
    %145 = vadd.xlane.f32.xlu0 %v144
    %v146 = vpop.xlane.xlu0 %145
    %v147 = vrot.slane %v146, 4
    %v148 = vadd.f32 %v146, %v147
    %v149 = vrot.slane %v148, 2
    %v150 = vadd.f32 %v148, %v149
    %v151 = vrot.slane %v150, 1
    %v152 = vadd.f32 %v150, %v151
    %s153 = vtos %v152
    %v154 = vsel %vm141, %v135, 0.0
    %v155 = vsel %vm141, %v136, 0.0
    %v156 = vadd.f32 %v154, %v155
    %157 = vadd.xlane.f32.xlu0 %v156
    %v158 = vpop.xlane.xlu0 %157
    %v159 = vrot.slane %v158, 4
    %v160 = vadd.f32 %v158, %v159
    %v161 = vrot.slane %v160, 2
    %v162 = vadd.f32 %v160, %v161
    %v163 = vrot.slane %v162, 1
    %v164 = vadd.f32 %v162, %v163
    %s165 = vtos %v164
    %v166 = vstv %s165
    %v167 = vrcp.pop %v166
    %s168 = vtos %v167
    %s169 = smul.f32 %s153, %s168
    %vm170 = vcmp.ge.f32.partialorder %v129, %v105
    %vm171 = vcmp.ge.f32.partialorder %v132, %v106
    %v172 = vsel %vm170, 1, 0
    %v173 = vsel %vm171, 1, 0
    %v174 = vcvt.s32.f32 %v172
    %v175 = vcvt.s32.f32 %v173
    %v176 = vsel %vm64, %v174, 0.0
    %v177 = vsel %vm65, %v175, 0.0
    %v178 = vsel %vm141, %v176, 0.0
    %v179 = vsel %vm141, %v177, 0.0
    %v180 = vadd.f32 %v178, %v179
    %181 = vadd.xlane.f32.xlu0 %v180
    %v182 = vpop.xlane.xlu0 %181
    %v183 = vrot.slane %v182, 4
    %v184 = vadd.f32 %v182, %v183
    %v185 = vrot.slane %v184, 2
    %v186 = vadd.f32 %v184, %v185
    %v187 = vrot.slane %v186, 1
    %v188 = vadd.f32 %v186, %v187
    %s189 = vtos %v188
    %s190 = smul.f32 %s189, 100.0
    %s191 = smax.f32 %s42, 1.0
    %v192 = vstv %s191
    %v193 = vrcp.pop %v192
    %s194 = vtos %v193
    %s195 = smul.f32 %s190, %s194
    %s196 = ssub.f32 100.0, %s195
    %vm197 = vcmp.ge.f32.partialorder %v101, %v93
    %vm198 = vcmp.ge.f32.partialorder %v104, %v96
    %v199 = vsel %vm197, 1, 0
    %v200 = vsel %vm198, 1, 0
    %v201 = vcvt.s32.f32 %v199
    %v202 = vcvt.s32.f32 %v200
    %v203 = vmul.u32 %v84, 8
    %vm204 = vcmp.ge.s32.totalorder %v48, %v203
    %vm205 = vcmp.ge.s32.totalorder %v49, %v203
    %v206 = vadd.s32 %v84, 1
    %v207 = vmul.u32 %v206, 8
    %vm208 = vcmp.lt.s32.totalorder %v48, %v207
    %vm209 = vcmp.lt.s32.totalorder %v49, %v207
    %vm210 = vmand %vm204, %vm208
    %vm211 = vmand %vm205, %vm209
    %v212 = vsel %vm210, %v201, 0.0
    %v213 = vsel %vm211, %v202, 0.0
    %vm214 = vcmask 15360
    %v215 = vsel %vm214, %v212, 0.0
    %v216 = vsel %vm214, %v213, 0.0
    %v217 = vadd.f32 %v215, %v216
    %v218 = vrot.slane %v217, 4
    %v219 = vadd.f32 %v217, %v218
    %v220 = vrot.slane %v219, 2
    %v221 = vadd.f32 %v219, %v220
    %v222 = vrot.slane %v221, 1
    %v223 = vadd.f32 %v221, %v222
    %v224 = vsub.f32 %v223, %v66
    %v225 = vand.u32 2147483647, %v224
    %v227 = vrot.slane %v225, 2
    %vm229 = vcmask 8192
    %v230 = vsel %vm229, %v227, 0.0
    %231 = vadd.xlane.f32.xlu0 %v230
    %v232 = vpop.xlane.xlu0 %231
    %v233 = vrot.slane %v232, 4
    %v234 = vadd.f32 %v232, %v233
    %v235 = vrot.slane %v234, 2
    %v236 = vadd.f32 %v234, %v235
    %v237 = vrot.slane %v236, 1
    %v238 = vadd.f32 %v236, %v237
    %s239 = vtos %v238
    %v240 = vrcp.pop 2.0
    %s241 = vtos %v240
    %s242 = smul.f32 %s239, %s241
    %v243 = vld [vmem:[%s3] sm:$0xff]
    %v244 = vld [vmem:[%s3 + $0x8] sm:$0xff]
    %v245 = vand.u32 2147483647, %v243
    %v246 = vand.u32 2147483647, %v244
    %v247 = vsub.f32 0.0, %v245
    %v248 = vsub.f32 0.0, %v246
    %v249 = vmul.f32 %v247, 1.442695
    %v250 = vpow.pop %v249
    %v251 = vmul.f32 %v248, 1.442695
    %v252 = vpow.pop %v251
    %v253 = vadd.f32 %v250, 1.0
    %v254 = vadd.f32 %v252, 1.0
    %v255 = vlog2.pop %v253
    %v256 = vmul.f32 %v255, 0.6931472
    %v257 = vlog2.pop %v254
    %v258 = vmul.f32 %v257, 0.6931472
    %v259 = vsub.f32 0.0, %v243
    %v260 = vsub.f32 0.0, %v244
    %v261 = vmin.f32 %v259, 0.0
    %v262 = vmin.f32 %v260, 0.0
    %v263 = vsub.f32 %v261, %v256
    %v264 = vsub.f32 %v262, %v258
    %v265 = vmin.f32 %v243, 0.0
    %v266 = vmin.f32 %v244, 0.0
    %v267 = vsub.f32 %v265, %v256
    %v268 = vsub.f32 %v266, %v258
    %v269 = vmul.f32 %v267, 1.442695
    %v270 = vpow.pop %v269
    %v271 = vmul.f32 %v268, 1.442695
    %v272 = vpow.pop %v271
    %v273 = vmul.f32 %v263, 0.5
    %v274 = vmul.f32 %v264, 0.5
    %v275 = vmul.f32 %v273, %v270
    %v276 = vmul.f32 %v274, %v272
    %v277 = vmul.f32 %v275, %v270
    %v278 = vmul.f32 %v276, %v272
    %vm279 = vcmask 48128
    %v280 = vsel %vm279, %v277, 0.0
    %v281 = vsel %vm279, %v278, 0.0
    %v282 = vadd.f32 %v280, %v281
    %283 = vadd.xlane.f32.xlu0 %v282
    %v284 = vpop.xlane.xlu0 %283
    %v285 = vrot.slane %v284, 4
    %v286 = vadd.f32 %v284, %v285
    %v287 = vrot.slane %v286, 2
    %v288 = vadd.f32 %v286, %v287
    %v289 = vrot.slane %v288, 1
    %v290 = vadd.f32 %v288, %v289
    %s291 = vtos %v290
    %292 = vxpose.xlu0.b32.start [1/16] %v58, 128
    %293 = vxpose.xlu0.b32.cont [2/16] %v59, 128
    %294 = vxpose.xlu0.b32.cont [3/16] 0.0, 128
    %295 = vxpose.xlu0.b32.cont [4/16] 0.0, 128
    %296 = vxpose.xlu0.b32.cont [5/16] 0.0, 128
    %297 = vxpose.xlu0.b32.cont [6/16] 0.0, 128
    %298 = vxpose.xlu0.b32.cont [7/16] 0.0, 128
    %299 = vxpose.xlu0.b32.cont [8/16] 0.0, 128
    %300 = vxpose.xlu0.b32.cont [9/16] 0.0, 128
    %301 = vxpose.xlu0.b32.cont [10/16] 0.0, 128
    %302 = vxpose.xlu0.b32.cont [11/16] 0.0, 128
    %303 = vxpose.xlu0.b32.cont [12/16] 0.0, 128
    %304 = vxpose.xlu0.b32.cont [13/16] 0.0, 128
    %305 = vxpose.xlu0.b32.cont [14/16] 0.0, 128
    %306 = vxpose.xlu0.b32.cont [15/16] 0.0, 128
    %307 = vxpose.xlu0.b32.end [16/16] 0.0, 128
    %v308 = vpop.trf.xlu0
    %v309 = vpop.trf.xlu0
    %v310 = vpop.trf.xlu0
    %v311 = vpop.trf.xlu0
    %v312 = vpop.trf.xlu0
    %v313 = vpop.trf.xlu0
    %v314 = vpop.trf.xlu0
    %v315 = vpop.trf.xlu0
    %v316 = vpop.trf.xlu0
    %v317 = vpop.trf.xlu0
    %v318 = vpop.trf.xlu0
    %v319 = vpop.trf.xlu0
    %v320 = vpop.trf.xlu0
    %v321 = vpop.trf.xlu0
    %v322 = vpop.trf.xlu0
    %v323 = vpop.trf.xlu0
    %vm324 = vcmask 130048
    %v326 = vsel %vm324, %v308, 0
    %v329 = vsel %vm324, %v309, 0
    %v332 = vsel %vm324, %v310, 0
    %v335 = vsel %vm324, %v311, 0
    %v338 = vsel %vm324, %v312, 0
    %v341 = vsel %vm324, %v313, 0
    %v344 = vsel %vm324, %v314, 0
    %v347 = vsel %vm324, %v315, 0
    %v350 = vsel %vm324, %v316, 0
    %v353 = vsel %vm324, %v317, 0
    %v356 = vsel %vm324, %v318, 0
    %v359 = vsel %vm324, %v319, 0
    %v362 = vsel %vm324, %v320, 0
    %v365 = vsel %vm324, %v321, 0
    %v368 = vsel %vm324, %v322, 0
    %v371 = vsel %vm324, %v323, 0
    %373 = vmatprep.subr.mxu0 0.0
    %374 = vmatpush1.msra.mxu0 %v243
    %375 = vmatprep.subr.mxu0 0.0
    %376 = vmatpush1.msra.mxu0 %v244
    %377 = vmatprep.subr.mxu0 0.0
    %378 = vmatpush1.msra.mxu0 0.0
    %379 = vmatprep.subr.mxu0 0.0
    %380 = vmatpush1.msra.mxu0 0.0
    %381 = vmatprep.subr.mxu0 0.0
    %382 = vmatpush1.msra.mxu0 0.0
    %383 = vmatprep.subr.mxu0 0.0
    %384 = vmatpush1.msra.mxu0 0.0
    %385 = vmatprep.subr.mxu0 0.0
    %386 = vmatpush1.msra.mxu0 0.0
    %387 = vmatprep.subr.mxu0 0.0
    %388 = vmatpush1.msra.mxu0 0.0
    %389 = vmatprep.subr.mxu0 0.0
    %390 = vmatpush1.msra.mxu0 0.0
    %391 = vmatprep.subr.mxu0 0.0
    %392 = vmatpush1.msra.mxu0 0.0
    %393 = vmatprep.subr.mxu0 0.0
    %394 = vmatpush1.msra.mxu0 0.0
    %395 = vmatprep.subr.mxu0 0.0
    %396 = vmatpush1.msra.mxu0 0.0
    %397 = vmatprep.subr.mxu0 0.0
    %398 = vmatpush1.msra.mxu0 0.0
    %399 = vmatprep.subr.mxu0 0.0
    %400 = vmatpush1.msra.mxu0 0.0
    %401 = vmatprep.subr.mxu0 0.0
    %402 = vmatpush1.msra.mxu0 0.0
    %403 = vmatprep.subr.mxu0 0.0
    %404 = vmatpush1.msra.mxu0 0.0
    %405 = vmatprep.subr.mxu0 0.0
    %406 = vmatpush1.msra.mxu0 0.0
    %407 = vmatprep.subr.mxu0 0.0
    %408 = vmatpush1.msra.mxu0 0.0
    %409 = vmatprep.subr.mxu0 0.0
    %410 = vmatpush1.msra.mxu0 0.0
    %411 = vmatprep.subr.mxu0 0.0
    %412 = vmatpush1.msra.mxu0 0.0
    %413 = vmatprep.subr.mxu0 0.0
    %414 = vmatpush1.msra.mxu0 0.0
    %415 = vmatprep.subr.mxu0 0.0
    %416 = vmatpush1.msra.mxu0 0.0
    %417 = vmatprep.subr.mxu0 0.0
    %418 = vmatpush1.msra.mxu0 0.0
    %419 = vmatprep.subr.mxu0 0.0
    %420 = vmatpush1.msra.mxu0 0.0
    %421 = vmatprep.subr.mxu0 0.0
    %422 = vmatpush1.msra.mxu0 0.0
    %423 = vmatprep.subr.mxu0 0.0
    %424 = vmatpush1.msra.mxu0 0.0
    %425 = vmatprep.subr.mxu0 0.0
    %426 = vmatpush1.msra.mxu0 0.0
    %427 = vmatprep.subr.mxu0 0.0
    %428 = vmatpush1.msra.mxu0 0.0
    %429 = vmatprep.subr.mxu0 0.0
    %430 = vmatpush1.msra.mxu0 0.0
    %431 = vmatprep.subr.mxu0 0.0
    %432 = vmatpush1.msra.mxu0 0.0
    %433 = vmatprep.subr.mxu0 0.0
    %434 = vmatpush1.msra.mxu0 0.0
    %435 = vmatprep.subr.mxu0 0.0
    %436 = vmatpush1.msra.mxu0 0.0
    %437 = vmatprep.mubr.f32.mxu0 0.0
    %438 = vmatmul.mubr.f32.gmra.mrb[0].mxu0 %v326
    %v439 = vpop.f32.mrb[0].mxu0
    %v440 = vadd.f32 0.0, %v439
    %v441 = vpop.f32.mrb[0].mxu0
    %442 = vmatprep.mubr.f32.mxu0 0.0
    %443 = vmatmul.mubr.f32.gmra.mrb[0].mxu0 %v329
    %v444 = vpop.f32.mrb[0].mxu0
    %v445 = vadd.f32 0.0, %v444
    %v446 = vpop.f32.mrb[0].mxu0
    %447 = vmatprep.mubr.f32.mxu0 0.0
    %448 = vmatmul.mubr.f32.gmra.mrb[0].mxu0 %v332
    %v449 = vpop.f32.mrb[0].mxu0
    %v450 = vadd.f32 0.0, %v449
    %v451 = vpop.f32.mrb[0].mxu0
    %452 = vmatprep.mubr.f32.mxu0 0.0
    %453 = vmatmul.mubr.f32.gmra.mrb[0].mxu0 %v335
    %v454 = vpop.f32.mrb[0].mxu0
    %v455 = vadd.f32 0.0, %v454
    %v456 = vpop.f32.mrb[0].mxu0
    %457 = vmatprep.mubr.f32.mxu0 0.0
    %458 = vmatmul.mubr.f32.gmra.mrb[0].mxu0 %v338
    %v459 = vpop.f32.mrb[0].mxu0
    %v460 = vadd.f32 0.0, %v459
    %v461 = vpop.f32.mrb[0].mxu0
    %462 = vmatprep.mubr.f32.mxu0 0.0
    %463 = vmatmul.mubr.f32.gmra.mrb[0].mxu0 %v341
    %v464 = vpop.f32.mrb[0].mxu0
    %v465 = vadd.f32 0.0, %v464
    %v466 = vpop.f32.mrb[0].mxu0
    %467 = vmatprep.mubr.f32.mxu0 0.0
    %468 = vmatmul.mubr.f32.gmra.mrb[0].mxu0 %v344
    %v469 = vpop.f32.mrb[0].mxu0
    %v470 = vadd.f32 0.0, %v469
    %v471 = vpop.f32.mrb[0].mxu0
    %472 = vmatprep.mubr.f32.mxu0 0.0
    %473 = vmatmul.mubr.f32.gmra.mrb[0].mxu0 %v347
    %v474 = vpop.f32.mrb[0].mxu0
    %v475 = vadd.f32 0.0, %v474
    %v476 = vpop.f32.mrb[0].mxu0
    %477 = vmatprep.mubr.f32.mxu0 0.0
    %478 = vmatmul.mubr.f32.gmra.mrb[0].mxu0 %v350
    %v479 = vpop.f32.mrb[0].mxu0
    %v480 = vadd.f32 0.0, %v479
    %v481 = vpop.f32.mrb[0].mxu0
    %482 = vmatprep.mubr.f32.mxu0 0.0
    %483 = vmatmul.mubr.f32.gmra.mrb[0].mxu0 %v353
    %v484 = vpop.f32.mrb[0].mxu0
    %v485 = vadd.f32 0.0, %v484
    %v486 = vpop.f32.mrb[0].mxu0
    %487 = vmatprep.mubr.f32.mxu0 0.0
    %488 = vmatmul.mubr.f32.gmra.mrb[0].mxu0 %v356
    %v489 = vpop.f32.mrb[0].mxu0
    %v490 = vadd.f32 0.0, %v489
    %v491 = vpop.f32.mrb[0].mxu0
    %492 = vmatprep.mubr.f32.mxu0 0.0
    %493 = vmatmul.mubr.f32.gmra.mrb[0].mxu0 %v359
    %v494 = vpop.f32.mrb[0].mxu0
    %v495 = vadd.f32 0.0, %v494
    %v496 = vpop.f32.mrb[0].mxu0
    %497 = vmatprep.mubr.f32.mxu0 0.0
    %498 = vmatmul.mubr.f32.gmra.mrb[0].mxu0 %v362
    %v499 = vpop.f32.mrb[0].mxu0
    %v500 = vadd.f32 0.0, %v499
    %v501 = vpop.f32.mrb[0].mxu0
    %502 = vmatprep.mubr.f32.mxu0 0.0
    %503 = vmatmul.mubr.f32.gmra.mrb[0].mxu0 %v365
    %v504 = vpop.f32.mrb[0].mxu0
    %v505 = vadd.f32 0.0, %v504
    %v506 = vpop.f32.mrb[0].mxu0
    %507 = vmatprep.mubr.f32.mxu0 0.0
    %508 = vmatmul.mubr.f32.gmra.mrb[0].mxu0 %v368
    %v509 = vpop.f32.mrb[0].mxu0
    %v510 = vadd.f32 0.0, %v509
    %v511 = vpop.f32.mrb[0].mxu0
    %512 = vmatprep.mubr.f32.mxu0 0.0
    %513 = vmatmul.mubr.f32.gmra.mrb[0].mxu0 %v371
    %v514 = vpop.f32.mrb[0].mxu0
    %v515 = vadd.f32 0.0, %v514
    %v516 = vpop.f32.mrb[0].mxu0
    %517 = vdwg.mxu0
    %v518 = vld [vmem:[%s4] sm:$0xff]
    %v519 = vld [vmem:[%s4 + $0x8] sm:$0xff]
    %v520 = vld [vmem:[%s4 + $0x10] sm:$0xff]
    %v521 = vld [vmem:[%s4 + $0x18] sm:$0xff]
    %v522 = vld [vmem:[%s4 + $0x20] sm:$0xff]
    %v523 = vld [vmem:[%s4 + $0x28] sm:$0xff]
    %v524 = vld [vmem:[%s4 + $0x30] sm:$0xff]
    %v525 = vld [vmem:[%s4 + $0x38] sm:$0xff]
    %v526 = vld [vmem:[%s4 + $0x40] sm:$0xff]
    %v527 = vld [vmem:[%s4 + $0x48] sm:$0xff]
    %v528 = vld [vmem:[%s4 + $0x50] sm:$0xff]
    %v529 = vld [vmem:[%s4 + $0x58] sm:$0xff]
    %v530 = vld [vmem:[%s4 + $0x60] sm:$0xff]
    %v531 = vld [vmem:[%s4 + $0x68] sm:$0xff]
    %v532 = vld [vmem:[%s4 + $0x70] sm:$0xff]
    %v533 = vld [vmem:[%s4 + $0x78] sm:$0xff]
    %v534 = vand.u32 2147483647, %v440
    %v535 = vand.u32 2147483647, %v445
    %v536 = vand.u32 2147483647, %v450
    %v537 = vand.u32 2147483647, %v455
    %v538 = vand.u32 2147483647, %v460
    %v539 = vand.u32 2147483647, %v465
    %v540 = vand.u32 2147483647, %v470
    %v541 = vand.u32 2147483647, %v475
    %v542 = vand.u32 2147483647, %v480
    %v543 = vand.u32 2147483647, %v485
    %v544 = vand.u32 2147483647, %v490
    %v545 = vand.u32 2147483647, %v495
    %v546 = vand.u32 2147483647, %v500
    %v547 = vand.u32 2147483647, %v505
    %v548 = vand.u32 2147483647, %v510
    %v549 = vand.u32 2147483647, %v515
    %v550 = vsub.f32 0.0, %v534
    %v551 = vsub.f32 0.0, %v535
    %v552 = vsub.f32 0.0, %v536
    %v553 = vsub.f32 0.0, %v537
    %v554 = vsub.f32 0.0, %v538
    %v555 = vsub.f32 0.0, %v539
    %v556 = vsub.f32 0.0, %v540
    %v557 = vsub.f32 0.0, %v541
    %v558 = vsub.f32 0.0, %v542
    %v559 = vsub.f32 0.0, %v543
    %v560 = vsub.f32 0.0, %v544
    %v561 = vsub.f32 0.0, %v545
    %v562 = vsub.f32 0.0, %v546
    %v563 = vsub.f32 0.0, %v547
    %v564 = vsub.f32 0.0, %v548
    %v565 = vsub.f32 0.0, %v549
    %v566 = vmul.f32 %v550, 1.442695
    %v567 = vpow.pop %v566
    %v568 = vmul.f32 %v551, 1.442695
    %v569 = vpow.pop %v568
    %v570 = vmul.f32 %v552, 1.442695
    %v571 = vpow.pop %v570
    %v572 = vmul.f32 %v553, 1.442695
    %v573 = vpow.pop %v572
    %v574 = vmul.f32 %v554, 1.442695
    %v575 = vpow.pop %v574
    %v576 = vmul.f32 %v555, 1.442695
    %v577 = vpow.pop %v576
    %v578 = vmul.f32 %v556, 1.442695
    %v579 = vpow.pop %v578
    %v580 = vmul.f32 %v557, 1.442695
    %v581 = vpow.pop %v580
    %v582 = vmul.f32 %v558, 1.442695
    %v583 = vpow.pop %v582
    %v584 = vmul.f32 %v559, 1.442695
    %v585 = vpow.pop %v584
    %v586 = vmul.f32 %v560, 1.442695
    %v587 = vpow.pop %v586
    %v588 = vmul.f32 %v561, 1.442695
    %v589 = vpow.pop %v588
    %v590 = vmul.f32 %v562, 1.442695
    %v591 = vpow.pop %v590
    %v592 = vmul.f32 %v563, 1.442695
    %v593 = vpow.pop %v592
    %v594 = vmul.f32 %v564, 1.442695
    %v595 = vpow.pop %v594
    %v596 = vmul.f32 %v565, 1.442695
    %v597 = vpow.pop %v596
    %v598 = vadd.f32 %v567, 1.0
    %v599 = vadd.f32 %v569, 1.0
    %v600 = vadd.f32 %v571, 1.0
    %v601 = vadd.f32 %v573, 1.0
    %v602 = vadd.f32 %v575, 1.0
    %v603 = vadd.f32 %v577, 1.0
    %v604 = vadd.f32 %v579, 1.0
    %v605 = vadd.f32 %v581, 1.0
    %v606 = vadd.f32 %v583, 1.0
    %v607 = vadd.f32 %v585, 1.0
    %v608 = vadd.f32 %v587, 1.0
    %v609 = vadd.f32 %v589, 1.0
    %v610 = vadd.f32 %v591, 1.0
    %v611 = vadd.f32 %v593, 1.0
    %v612 = vadd.f32 %v595, 1.0
    %v613 = vadd.f32 %v597, 1.0
    %v614 = vlog2.pop %v598
    %v615 = vmul.f32 %v614, 0.6931472
    %v616 = vlog2.pop %v599
    %v617 = vmul.f32 %v616, 0.6931472
    %v618 = vlog2.pop %v600
    %v619 = vmul.f32 %v618, 0.6931472
    %v620 = vlog2.pop %v601
    %v621 = vmul.f32 %v620, 0.6931472
    %v622 = vlog2.pop %v602
    %v623 = vmul.f32 %v622, 0.6931472
    %v624 = vlog2.pop %v603
    %v625 = vmul.f32 %v624, 0.6931472
    %v626 = vlog2.pop %v604
    %v627 = vmul.f32 %v626, 0.6931472
    %v628 = vlog2.pop %v605
    %v629 = vmul.f32 %v628, 0.6931472
    %v630 = vlog2.pop %v606
    %v631 = vmul.f32 %v630, 0.6931472
    %v632 = vlog2.pop %v607
    %v633 = vmul.f32 %v632, 0.6931472
    %v634 = vlog2.pop %v608
    %v635 = vmul.f32 %v634, 0.6931472
    %v636 = vlog2.pop %v609
    %v637 = vmul.f32 %v636, 0.6931472
    %v638 = vlog2.pop %v610
    %v639 = vmul.f32 %v638, 0.6931472
    %v640 = vlog2.pop %v611
    %v641 = vmul.f32 %v640, 0.6931472
    %v642 = vlog2.pop %v612
    %v643 = vmul.f32 %v642, 0.6931472
    %v644 = vlog2.pop %v613
    %v645 = vmul.f32 %v644, 0.6931472
    %v646 = vmin.f32 %v440, 0.0
    %v647 = vmin.f32 %v445, 0.0
    %v648 = vmin.f32 %v450, 0.0
    %v649 = vmin.f32 %v455, 0.0
    %v650 = vmin.f32 %v460, 0.0
    %v651 = vmin.f32 %v465, 0.0
    %v652 = vmin.f32 %v470, 0.0
    %v653 = vmin.f32 %v475, 0.0
    %v654 = vmin.f32 %v480, 0.0
    %v655 = vmin.f32 %v485, 0.0
    %v656 = vmin.f32 %v490, 0.0
    %v657 = vmin.f32 %v495, 0.0
    %v658 = vmin.f32 %v500, 0.0
    %v659 = vmin.f32 %v505, 0.0
    %v660 = vmin.f32 %v510, 0.0
    %v661 = vmin.f32 %v515, 0.0
    %v662 = vsub.f32 %v646, %v615
    %v663 = vsub.f32 %v647, %v617
    %v664 = vsub.f32 %v648, %v619
    %v665 = vsub.f32 %v649, %v621
    %v666 = vsub.f32 %v650, %v623
    %v667 = vsub.f32 %v651, %v625
    %v668 = vsub.f32 %v652, %v627
    %v669 = vsub.f32 %v653, %v629
    %v670 = vsub.f32 %v654, %v631
    %v671 = vsub.f32 %v655, %v633
    %v672 = vsub.f32 %v656, %v635
    %v673 = vsub.f32 %v657, %v637
    %v674 = vsub.f32 %v658, %v639
    %v675 = vsub.f32 %v659, %v641
    %v676 = vsub.f32 %v660, %v643
    %v677 = vsub.f32 %v661, %v645
    %v678 = vsub.f32 0.0, %v440
    %v679 = vsub.f32 0.0, %v445
    %v680 = vsub.f32 0.0, %v450
    %v681 = vsub.f32 0.0, %v455
    %v682 = vsub.f32 0.0, %v460
    %v683 = vsub.f32 0.0, %v465
    %v684 = vsub.f32 0.0, %v470
    %v685 = vsub.f32 0.0, %v475
    %v686 = vsub.f32 0.0, %v480
    %v687 = vsub.f32 0.0, %v485
    %v688 = vsub.f32 0.0, %v490
    %v689 = vsub.f32 0.0, %v495
    %v690 = vsub.f32 0.0, %v500
    %v691 = vsub.f32 0.0, %v505
    %v692 = vsub.f32 0.0, %v510
    %v693 = vsub.f32 0.0, %v515
    %v694 = vmin.f32 %v678, 0.0
    %v695 = vmin.f32 %v679, 0.0
    %v696 = vmin.f32 %v680, 0.0
    %v697 = vmin.f32 %v681, 0.0
    %v698 = vmin.f32 %v682, 0.0
    %v699 = vmin.f32 %v683, 0.0
    %v700 = vmin.f32 %v684, 0.0
    %v701 = vmin.f32 %v685, 0.0
    %v702 = vmin.f32 %v686, 0.0
    %v703 = vmin.f32 %v687, 0.0
    %v704 = vmin.f32 %v688, 0.0
    %v705 = vmin.f32 %v689, 0.0
    %v706 = vmin.f32 %v690, 0.0
    %v707 = vmin.f32 %v691, 0.0
    %v708 = vmin.f32 %v692, 0.0
    %v709 = vmin.f32 %v693, 0.0
    %v710 = vsub.f32 %v694, %v615
    %v711 = vsub.f32 %v695, %v617
    %v712 = vsub.f32 %v696, %v619
    %v713 = vsub.f32 %v697, %v621
    %v714 = vsub.f32 %v698, %v623
    %v715 = vsub.f32 %v699, %v625
    %v716 = vsub.f32 %v700, %v627
    %v717 = vsub.f32 %v701, %v629
    %v718 = vsub.f32 %v702, %v631
    %v719 = vsub.f32 %v703, %v633
    %v720 = vsub.f32 %v704, %v635
    %v721 = vsub.f32 %v705, %v637
    %v722 = vsub.f32 %v706, %v639
    %v723 = vsub.f32 %v707, %v641
    %v724 = vsub.f32 %v708, %v643
    %v725 = vsub.f32 %v709, %v645
    %v726 = vmul.f32 %v662, 1.442695
    %v727 = vpow.pop %v726
    %v728 = vmul.f32 %v663, 1.442695
    %v729 = vpow.pop %v728
    %v730 = vmul.f32 %v664, 1.442695
    %v731 = vpow.pop %v730
    %v732 = vmul.f32 %v665, 1.442695
    %v733 = vpow.pop %v732
    %v734 = vmul.f32 %v666, 1.442695
    %v735 = vpow.pop %v734
    %v736 = vmul.f32 %v667, 1.442695
    %v737 = vpow.pop %v736
    %v738 = vmul.f32 %v668, 1.442695
    %v739 = vpow.pop %v738
    %v740 = vmul.f32 %v669, 1.442695
    %v741 = vpow.pop %v740
    %v742 = vmul.f32 %v670, 1.442695
    %v743 = vpow.pop %v742
    %v744 = vmul.f32 %v671, 1.442695
    %v745 = vpow.pop %v744
    %v746 = vmul.f32 %v672, 1.442695
    %v747 = vpow.pop %v746
    %v748 = vmul.f32 %v673, 1.442695
    %v749 = vpow.pop %v748
    %v750 = vmul.f32 %v674, 1.442695
    %v751 = vpow.pop %v750
    %v752 = vmul.f32 %v675, 1.442695
    %v753 = vpow.pop %v752
    %v754 = vmul.f32 %v676, 1.442695
    %v755 = vpow.pop %v754
    %v756 = vmul.f32 %v677, 1.442695
    %v757 = vpow.pop %v756
    %vm758 = vcmp.eq.f32.partialorder %v518, 1.0
    %vm759 = vcmp.eq.f32.partialorder %v519, 1.0
    %vm760 = vcmp.eq.f32.partialorder %v520, 1.0
    %vm761 = vcmp.eq.f32.partialorder %v521, 1.0
    %vm762 = vcmp.eq.f32.partialorder %v522, 1.0
    %vm763 = vcmp.eq.f32.partialorder %v523, 1.0
    %vm764 = vcmp.eq.f32.partialorder %v524, 1.0
    %vm765 = vcmp.eq.f32.partialorder %v525, 1.0
    %vm766 = vcmp.eq.f32.partialorder %v526, 1.0
    %vm767 = vcmp.eq.f32.partialorder %v527, 1.0
    %vm768 = vcmp.eq.f32.partialorder %v528, 1.0
    %vm769 = vcmp.eq.f32.partialorder %v529, 1.0
    %vm770 = vcmp.eq.f32.partialorder %v530, 1.0
    %vm771 = vcmp.eq.f32.partialorder %v531, 1.0
    %vm772 = vcmp.eq.f32.partialorder %v532, 1.0
    %vm773 = vcmp.eq.f32.partialorder %v533, 1.0
    %v774 = vmul.f32 %v662, 0.5
    %v775 = vmul.f32 %v663, 0.5
    %v776 = vmul.f32 %v664, 0.5
    %v777 = vmul.f32 %v665, 0.5
    %v778 = vmul.f32 %v666, 0.5
    %v779 = vmul.f32 %v667, 0.5
    %v780 = vmul.f32 %v668, 0.5
    %v781 = vmul.f32 %v669, 0.5
    %v782 = vmul.f32 %v670, 0.5
    %v783 = vmul.f32 %v671, 0.5
    %v784 = vmul.f32 %v672, 0.5
    %v785 = vmul.f32 %v673, 0.5
    %v786 = vmul.f32 %v674, 0.5
    %v787 = vmul.f32 %v675, 0.5
    %v788 = vmul.f32 %v676, 0.5
    %v789 = vmul.f32 %v677, 0.5
    %v790 = vsub.f32 1.0, %v727
    %v791 = vsub.f32 1.0, %v729
    %v792 = vsub.f32 1.0, %v731
    %v793 = vsub.f32 1.0, %v733
    %v794 = vsub.f32 1.0, %v735
    %v795 = vsub.f32 1.0, %v737
    %v796 = vsub.f32 1.0, %v739
    %v797 = vsub.f32 1.0, %v741
    %v798 = vsub.f32 1.0, %v743
    %v799 = vsub.f32 1.0, %v745
    %v800 = vsub.f32 1.0, %v747
    %v801 = vsub.f32 1.0, %v749
    %v802 = vsub.f32 1.0, %v751
    %v803 = vsub.f32 1.0, %v753
    %v804 = vsub.f32 1.0, %v755
    %v805 = vsub.f32 1.0, %v757
    %v806 = vmul.f32 %v790, %v790
    %v807 = vmul.f32 %v791, %v791
    %v808 = vmul.f32 %v792, %v792
    %v809 = vmul.f32 %v793, %v793
    %v810 = vmul.f32 %v794, %v794
    %v811 = vmul.f32 %v795, %v795
    %v812 = vmul.f32 %v796, %v796
    %v813 = vmul.f32 %v797, %v797
    %v814 = vmul.f32 %v798, %v798
    %v815 = vmul.f32 %v799, %v799
    %v816 = vmul.f32 %v800, %v800
    %v817 = vmul.f32 %v801, %v801
    %v818 = vmul.f32 %v802, %v802
    %v819 = vmul.f32 %v803, %v803
    %v820 = vmul.f32 %v804, %v804
    %v821 = vmul.f32 %v805, %v805
    %v822 = vmul.f32 %v774, %v806
    %v823 = vmul.f32 %v775, %v807
    %v824 = vmul.f32 %v776, %v808
    %v825 = vmul.f32 %v777, %v809
    %v826 = vmul.f32 %v778, %v810
    %v827 = vmul.f32 %v779, %v811
    %v828 = vmul.f32 %v780, %v812
    %v829 = vmul.f32 %v781, %v813
    %v830 = vmul.f32 %v782, %v814
    %v831 = vmul.f32 %v783, %v815
    %v832 = vmul.f32 %v784, %v816
    %v833 = vmul.f32 %v785, %v817
    %v834 = vmul.f32 %v786, %v818
    %v835 = vmul.f32 %v787, %v819
    %v836 = vmul.f32 %v788, %v820
    %v837 = vmul.f32 %v789, %v821
    %v838 = vmul.f32 %v710, 0.5
    %v839 = vmul.f32 %v711, 0.5
    %v840 = vmul.f32 %v712, 0.5
    %v841 = vmul.f32 %v713, 0.5
    %v842 = vmul.f32 %v714, 0.5
    %v843 = vmul.f32 %v715, 0.5
    %v844 = vmul.f32 %v716, 0.5
    %v845 = vmul.f32 %v717, 0.5
    %v846 = vmul.f32 %v718, 0.5
    %v847 = vmul.f32 %v719, 0.5
    %v848 = vmul.f32 %v720, 0.5
    %v849 = vmul.f32 %v721, 0.5
    %v850 = vmul.f32 %v722, 0.5
    %v851 = vmul.f32 %v723, 0.5
    %v852 = vmul.f32 %v724, 0.5
    %v853 = vmul.f32 %v725, 0.5
    %v854 = vmul.f32 %v838, %v727
    %v855 = vmul.f32 %v839, %v729
    %v856 = vmul.f32 %v840, %v731
    %v857 = vmul.f32 %v841, %v733
    %v858 = vmul.f32 %v842, %v735
    %v859 = vmul.f32 %v843, %v737
    %v860 = vmul.f32 %v844, %v739
    %v861 = vmul.f32 %v845, %v741
    %v862 = vmul.f32 %v846, %v743
    %v863 = vmul.f32 %v847, %v745
    %v864 = vmul.f32 %v848, %v747
    %v865 = vmul.f32 %v849, %v749
    %v866 = vmul.f32 %v850, %v751
    %v867 = vmul.f32 %v851, %v753
    %v868 = vmul.f32 %v852, %v755
    %v869 = vmul.f32 %v853, %v757
    %v870 = vmul.f32 %v854, %v727
    %v871 = vmul.f32 %v855, %v729
    %v872 = vmul.f32 %v856, %v731
    %v873 = vmul.f32 %v857, %v733
    %v874 = vmul.f32 %v858, %v735
    %v875 = vmul.f32 %v859, %v737
    %v876 = vmul.f32 %v860, %v739
    %v877 = vmul.f32 %v861, %v741
    %v878 = vmul.f32 %v862, %v743
    %v879 = vmul.f32 %v863, %v745
    %v880 = vmul.f32 %v864, %v747
    %v881 = vmul.f32 %v865, %v749
    %v882 = vmul.f32 %v866, %v751
    %v883 = vmul.f32 %v867, %v753
    %v884 = vmul.f32 %v868, %v755
    %v885 = vmul.f32 %v869, %v757
    %v886 = vsub.f32 %v822, %v870
    %v887 = vsub.f32 %v823, %v871
    %v888 = vsub.f32 %v824, %v872
    %v889 = vsub.f32 %v825, %v873
    %v890 = vsub.f32 %v826, %v874
    %v891 = vsub.f32 %v827, %v875
    %v892 = vsub.f32 %v828, %v876
    %v893 = vsub.f32 %v829, %v877
    %v894 = vsub.f32 %v830, %v878
    %v895 = vsub.f32 %v831, %v879
    %v896 = vsub.f32 %v832, %v880
    %v897 = vsub.f32 %v833, %v881
    %v898 = vsub.f32 %v834, %v882
    %v899 = vsub.f32 %v835, %v883
    %v900 = vsub.f32 %v836, %v884
    %v901 = vsub.f32 %v837, %v885
    %v902 = vsel %vm758, %v886, 0.0
    %v903 = vsel %vm759, %v887, 0.0
    %v904 = vsel %vm760, %v888, 0.0
    %v905 = vsel %vm761, %v889, 0.0
    %v906 = vsel %vm762, %v890, 0.0
    %v907 = vsel %vm763, %v891, 0.0
    %v908 = vsel %vm764, %v892, 0.0
    %v909 = vsel %vm765, %v893, 0.0
    %v910 = vsel %vm766, %v894, 0.0
    %v911 = vsel %vm767, %v895, 0.0
    %v912 = vsel %vm768, %v896, 0.0
    %v913 = vsel %vm769, %v897, 0.0
    %v914 = vsel %vm770, %v898, 0.0
    %v915 = vsel %vm771, %v899, 0.0
    %v916 = vsel %vm772, %v900, 0.0
    %v917 = vsel %vm773, %v901, 0.0
    %v918 = vsel %vm279, %v902, 0.0
    %v919 = vsel %vm279, %v903, 0.0
    %v920 = vadd.f32 %v918, %v919
    %v921 = vsel %vm279, %v904, 0.0
    %v922 = vadd.f32 %v920, %v921
    %v923 = vsel %vm279, %v905, 0.0
    %v924 = vadd.f32 %v922, %v923
    %v925 = vsel %vm279, %v906, 0.0
    %v926 = vadd.f32 %v924, %v925
    %v927 = vsel %vm279, %v907, 0.0
    %v928 = vadd.f32 %v926, %v927
    %v929 = vsel %vm279, %v908, 0.0
    %v930 = vadd.f32 %v928, %v929
    %v931 = vsel %vm279, %v909, 0.0
    %v932 = vadd.f32 %v930, %v931
    %v933 = vsel %vm279, %v910, 0.0
    %v934 = vadd.f32 %v932, %v933
    %v935 = vsel %vm279, %v911, 0.0
    %v936 = vadd.f32 %v934, %v935
    %v937 = vsel %vm279, %v912, 0.0
    %v938 = vadd.f32 %v936, %v937
    %v939 = vsel %vm279, %v913, 0.0
    %v940 = vadd.f32 %v938, %v939
    %v941 = vsel %vm279, %v914, 0.0
    %v942 = vadd.f32 %v940, %v941
    %v943 = vsel %vm279, %v915, 0.0
    %v944 = vadd.f32 %v942, %v943
    %v945 = vsel %vm279, %v916, 0.0
    %v946 = vadd.f32 %v944, %v945
    %v947 = vsel %vm279, %v917, 0.0
    %v948 = vadd.f32 %v946, %v947
    %949 = vadd.xlane.f32.xlu0 %v948
    %v950 = vpop.xlane.xlu0 %949
    %v951 = vrot.slane %v950, 4
    %v952 = vadd.f32 %v950, %v951
    %v953 = vrot.slane %v952, 2
    %v954 = vadd.f32 %v952, %v953
    %v955 = vrot.slane %v954, 1
    %v956 = vadd.f32 %v954, %v955
    %s957 = vtos %v956
    %s958 = sadd.f32 %s291, %s957
    %v959 = vsel %vm758, 1, 0
    %v960 = vsel %vm759, 1, 0
    %v961 = vsel %vm760, 1, 0
    %v962 = vsel %vm761, 1, 0
    %v963 = vsel %vm762, 1, 0
    %v964 = vsel %vm763, 1, 0
    %v965 = vsel %vm764, 1, 0
    %v966 = vsel %vm765, 1, 0
    %v967 = vsel %vm766, 1, 0
    %v968 = vsel %vm767, 1, 0
    %v969 = vsel %vm768, 1, 0
    %v970 = vsel %vm769, 1, 0
    %v971 = vsel %vm770, 1, 0
    %v972 = vsel %vm771, 1, 0
    %v973 = vsel %vm772, 1, 0
    %v974 = vsel %vm773, 1, 0
    %v975 = vcvt.s32.f32 %v959
    %v976 = vcvt.s32.f32 %v960
    %v977 = vcvt.s32.f32 %v961
    %v978 = vcvt.s32.f32 %v962
    %v979 = vcvt.s32.f32 %v963
    %v980 = vcvt.s32.f32 %v964
    %v981 = vcvt.s32.f32 %v965
    %v982 = vcvt.s32.f32 %v966
    %v983 = vcvt.s32.f32 %v967
    %v984 = vcvt.s32.f32 %v968
    %v985 = vcvt.s32.f32 %v969
    %v986 = vcvt.s32.f32 %v970
    %v987 = vcvt.s32.f32 %v971
    %v988 = vcvt.s32.f32 %v972
    %v989 = vcvt.s32.f32 %v973
    %v990 = vcvt.s32.f32 %v974
    %v991 = vsel %vm279, %v975, 0.0
    %v992 = vsel %vm279, %v976, 0.0
    %v993 = vadd.f32 %v991, %v992
    %v994 = vsel %vm279, %v977, 0.0
    %v995 = vadd.f32 %v993, %v994
    %v996 = vsel %vm279, %v978, 0.0
    %v997 = vadd.f32 %v995, %v996
    %v998 = vsel %vm279, %v979, 0.0
    %v999 = vadd.f32 %v997, %v998
    %v1000 = vsel %vm279, %v980, 0.0
    %v1001 = vadd.f32 %v999, %v1000
    %v1002 = vsel %vm279, %v981, 0.0
    %v1003 = vadd.f32 %v1001, %v1002
    %v1004 = vsel %vm279, %v982, 0.0
    %v1005 = vadd.f32 %v1003, %v1004
    %v1006 = vsel %vm279, %v983, 0.0
    %v1007 = vadd.f32 %v1005, %v1006
    %v1008 = vsel %vm279, %v984, 0.0
    %v1009 = vadd.f32 %v1007, %v1008
    %v1010 = vsel %vm279, %v985, 0.0
    %v1011 = vadd.f32 %v1009, %v1010
    %v1012 = vsel %vm279, %v986, 0.0
    %v1013 = vadd.f32 %v1011, %v1012
    %v1014 = vsel %vm279, %v987, 0.0
    %v1015 = vadd.f32 %v1013, %v1014
    %v1016 = vsel %vm279, %v988, 0.0
    %v1017 = vadd.f32 %v1015, %v1016
    %v1018 = vsel %vm279, %v989, 0.0
    %v1019 = vadd.f32 %v1017, %v1018
    %v1020 = vsel %vm279, %v990, 0.0
    %v1021 = vadd.f32 %v1019, %v1020
    %1022 = vadd.xlane.f32.xlu0 %v1021
    %v1023 = vpop.xlane.xlu0 %1022
    %v1024 = vrot.slane %v1023, 4
    %v1025 = vadd.f32 %v1023, %v1024
    %v1026 = vrot.slane %v1025, 2
    %v1027 = vadd.f32 %v1025, %v1026
    %v1028 = vrot.slane %v1027, 1
    %v1029 = vadd.f32 %v1027, %v1028
    %s1030 = vtos %v1029
    %p1031 = scmp.eq.f32.partialorder %s1030, 0.0
    %s1032 = ssub.f32 0.0, %s958
    %s1033 = smax.f32 %s1030, 1.0
    %v1034 = vstv %s1033
    %v1035 = vrcp.pop %v1034
    %s1036 = vtos %v1035
    %s1037 = smul.f32 %s1032, %s1036
    %s1038 = scalar_select %p1031, %s1032, %s1037
    %v1039 = vld [vmem:[%s5] sm:$0xff]
    %v1040 = vld [vmem:[%s5 + $0x8] sm:$0xff]
    %1041 = vxpose.xlu0.b32.start [1/16] %v1039, 128
    %1042 = vxpose.xlu0.b32.cont [2/16] %v1040, 128
    %1043 = vxpose.xlu0.b32.cont [3/16] 0.0, 128
    %1044 = vxpose.xlu0.b32.cont [4/16] 0.0, 128
    %1045 = vxpose.xlu0.b32.cont [5/16] 0.0, 128
    %1046 = vxpose.xlu0.b32.cont [6/16] 0.0, 128
    %1047 = vxpose.xlu0.b32.cont [7/16] 0.0, 128
    %1048 = vxpose.xlu0.b32.cont [8/16] 0.0, 128
    %1049 = vxpose.xlu0.b32.cont [9/16] 0.0, 128
    %1050 = vxpose.xlu0.b32.cont [10/16] 0.0, 128
    %1051 = vxpose.xlu0.b32.cont [11/16] 0.0, 128
    %1052 = vxpose.xlu0.b32.cont [12/16] 0.0, 128
    %1053 = vxpose.xlu0.b32.cont [13/16] 0.0, 128
    %1054 = vxpose.xlu0.b32.cont [14/16] 0.0, 128
    %1055 = vxpose.xlu0.b32.cont [15/16] 0.0, 128
    %1056 = vxpose.xlu0.b32.end [16/16] 0.0, 128
    %v1057 = vpop.trf.xlu0
    %v1058 = vpop.trf.xlu0
    %v1059 = vpop.trf.xlu0
    %v1060 = vpop.trf.xlu0
    %v1061 = vpop.trf.xlu0
    %v1062 = vpop.trf.xlu0
    %v1063 = vpop.trf.xlu0
    %v1064 = vpop.trf.xlu0
    %v1065 = vpop.trf.xlu0
    %v1066 = vpop.trf.xlu0
    %v1067 = vpop.trf.xlu0
    %v1068 = vpop.trf.xlu0
    %v1069 = vpop.trf.xlu0
    %v1070 = vpop.trf.xlu0
    %v1071 = vpop.trf.xlu0
    %v1072 = vpop.trf.xlu0
    %v1074 = vsel %vm324, %v1057, 0
    %1076 = vmatprep.subr.mxu0 0.0
    %1077 = vmatpush1.msra.mxu0 %v58
    %1078 = vmatprep.subr.mxu0 0.0
    %1079 = vmatpush1.msra.mxu0 %v59
    %1080 = vmatprep.subr.mxu0 0.0
    %1081 = vmatpush1.msra.mxu0 0.0
    %1082 = vmatprep.subr.mxu0 0.0
    %1083 = vmatpush1.msra.mxu0 0.0
    %1084 = vmatprep.subr.mxu0 0.0
    %1085 = vmatpush1.msra.mxu0 0.0
    %1086 = vmatprep.subr.mxu0 0.0
    %1087 = vmatpush1.msra.mxu0 0.0
    %1088 = vmatprep.subr.mxu0 0.0
    %1089 = vmatpush1.msra.mxu0 0.0
    %1090 = vmatprep.subr.mxu0 0.0
    %1091 = vmatpush1.msra.mxu0 0.0
    %1092 = vmatprep.subr.mxu0 0.0
    %1093 = vmatpush1.msra.mxu0 0.0
    %1094 = vmatprep.subr.mxu0 0.0
    %1095 = vmatpush1.msra.mxu0 0.0
    %1096 = vmatprep.subr.mxu0 0.0
    %1097 = vmatpush1.msra.mxu0 0.0
    %1098 = vmatprep.subr.mxu0 0.0
    %1099 = vmatpush1.msra.mxu0 0.0
    %1100 = vmatprep.subr.mxu0 0.0
    %1101 = vmatpush1.msra.mxu0 0.0
    %1102 = vmatprep.subr.mxu0 0.0
    %1103 = vmatpush1.msra.mxu0 0.0
    %1104 = vmatprep.subr.mxu0 0.0
    %1105 = vmatpush1.msra.mxu0 0.0
    %1106 = vmatprep.subr.mxu0 0.0
    %1107 = vmatpush1.msra.mxu0 0.0
    %1108 = vmatprep.subr.mxu0 0.0
    %1109 = vmatpush1.msra.mxu0 0.0
    %1110 = vmatprep.subr.mxu0 0.0
    %1111 = vmatpush1.msra.mxu0 0.0
    %1112 = vmatprep.subr.mxu0 0.0
    %1113 = vmatpush1.msra.mxu0 0.0
    %1114 = vmatprep.subr.mxu0 0.0
    %1115 = vmatpush1.msra.mxu0 0.0
    %1116 = vmatprep.subr.mxu0 0.0
    %1117 = vmatpush1.msra.mxu0 0.0
    %1118 = vmatprep.subr.mxu0 0.0
    %1119 = vmatpush1.msra.mxu0 0.0
    %1120 = vmatprep.subr.mxu0 0.0
    %1121 = vmatpush1.msra.mxu0 0.0
    %1122 = vmatprep.subr.mxu0 0.0
    %1123 = vmatpush1.msra.mxu0 0.0
    %1124 = vmatprep.subr.mxu0 0.0
    %1125 = vmatpush1.msra.mxu0 0.0
    %1126 = vmatprep.subr.mxu0 0.0
    %1127 = vmatpush1.msra.mxu0 0.0
    %1128 = vmatprep.subr.mxu0 0.0
    %1129 = vmatpush1.msra.mxu0 0.0
    %1130 = vmatprep.subr.mxu0 0.0
    %1131 = vmatpush1.msra.mxu0 0.0
    %1132 = vmatprep.subr.mxu0 0.0
    %1133 = vmatpush1.msra.mxu0 0.0
    %1134 = vmatprep.subr.mxu0 0.0
    %1135 = vmatpush1.msra.mxu0 0.0
    %1136 = vmatprep.subr.mxu0 0.0
    %1137 = vmatpush1.msra.mxu0 0.0
    %1138 = vmatprep.subr.mxu0 0.0
    %1139 = vmatpush1.msra.mxu0 0.0
    %1140 = vmatprep.mubr.f32.mxu0 0.0
    %1141 = vmatmul.mubr.f32.gmra.mrb[0].mxu0 %v1074
    %v1142 = vpop.f32.mrb[0].mxu0
    %v1143 = vadd.f32 0.0, %v1142
    %v1144 = vpop.f32.mrb[0].mxu0
    %1145 = vdwg.mxu0
    %v1146 = vld [vmem:[%s6] sm:$0xff]
    %v1147 = vand.u32 2147483647, %v1146
    %v1149 = vrot.slane %v1147, 4
    %vm1151 = vcmask 1043456
    %v1152 = vsel %vm1151, %v1149, 0.0
    %v1153 = vrot.slane %v1152, 4
    %v1154 = vadd.f32 %v1152, %v1153
    %v1155 = vrot.slane %v1154, 2
    %v1156 = vadd.f32 %v1154, %v1155
    %v1157 = vrot.slane %v1156, 1
    %v1158 = vadd.f32 %v1156, %v1157
    %vm1159 = vcmp.gt.f32.partialorder %v1158, 0.0
    %vm1160 = vmand %vm29, %vm1159
    %v1161 = vsub.f32 %v1143, %v1146
    %v1162 = vand.u32 2147483647, %v1161
    %v1163 = vlaneseq
    %v1164 = vshrl.u32 %v1163, 7
    %v1165 = vsub.s32 0, %v1164
    %v1166 = vrot.slane %v30, %v1165
    %vm1167 = vcmp.eq.s32.totalorder %v1166, 1
    %v1168 = vsel %vm1167, %v1162, 0.0
    %v1169 = vsel %vm1151, %v1168, 0.0
    %1170 = vadd.xlane.f32.xlu0 %v1169
    %v1171 = vpop.xlane.xlu0 %1170
    %v1172 = vrot.slane %v1171, 4
    %v1173 = vadd.f32 %v1171, %v1172
    %v1174 = vrot.slane %v1173, 2
    %v1175 = vadd.f32 %v1173, %v1174
    %v1176 = vrot.slane %v1175, 1
    %v1177 = vadd.f32 %v1175, %v1176
    %s1178 = vtos %v1177
    %v1179 = vsel %vm1160, 1, 0
    %v1180 = vlaneseq
    %v1181 = vshrl.u32 %v1180, 7
    %v1182 = vsub.s32 0, %v1181
    %v1183 = vrot.slane %v1179, %v1182
    %vm1184 = vcmp.eq.s32.totalorder %v1183, 1
    %v1185 = vsel %vm1184, %v1162, 0.0
    %v1187 = vrot.slane %v1185, 4
    %v1189 = vsel %vm1151, %v1187, 0.0
    %1190 = vadd.xlane.f32.xlu0 %v1189
    %v1191 = vpop.xlane.xlu0 %1190
    %v1192 = vrot.slane %v1191, 4
    %v1193 = vadd.f32 %v1191, %v1192
    %v1194 = vrot.slane %v1193, 2
    %v1195 = vadd.f32 %v1193, %v1194
    %v1196 = vrot.slane %v1195, 1
    %v1197 = vadd.f32 %v1195, %v1196
    %s1198 = vtos %v1197
    %v1199 = vsel %vm1160, 1.0, 0.0
    %v1200 = vsel %vm32, %v1199, 0.0
    %1201 = vadd.xlane.f32.xlu0 %v1200
    %v1202 = vpop.xlane.xlu0 %1201
    %v1203 = vrot.slane %v1202, 4
    %v1204 = vadd.f32 %v1202, %v1203
    %v1205 = vrot.slane %v1204, 2
    %v1206 = vadd.f32 %v1204, %v1205
    %v1207 = vrot.slane %v1206, 1
    %v1208 = vadd.f32 %v1206, %v1207
    %s1209 = vtos %v1208
    %v1210 = vmul.f32 %v1143, 0.5
    %v1212 = vrot.slane %v1210, 2
    %v1214 = vsub.f32 %v1143, %v1212
    %v1215 = vadd.f32 %v1143, %v1212
    %v1216 = vmul.f32 %v1146, 0.5
    %v1218 = vrot.slane %v1216, 2
    %v1220 = vsub.f32 %v1146, %v1218
    %v1221 = vadd.f32 %v1146, %v1218
    %v1222 = vsub.f32 %v1215, %v1214
    %v1224 = vrot.slane %v1222, 1
    %v1226 = vmul.f32 %v1222, %v1224
    %v1227 = vsub.f32 %v1221, %v1220
    %v1229 = vrot.slane %v1227, 1
    %v1231 = vmul.f32 %v1227, %v1229
    %v1232 = vmin.f32 %v1215, %v1221
    %v1233 = vmax.f32 %v1214, %v1220
    %v1234 = vsub.f32 %v1232, %v1233
    %v1235 = vmax.f32 %v1234, 0.0
    %v1237 = vrot.slane %v1235, 1
    %v1239 = vmul.f32 %v1235, %v1237
    %v1240 = vadd.f32 %v1226, %v1231
    %v1241 = vsub.f32 %v1240, %v1239
    %v1242 = vadd.f32 %v1241, 1e-07
    %v1243 = vrcp.pop %v1242
    %v1244 = vmul.f32 %v1239, %v1243
    %v1245 = vmax.f32 %v1215, %v1221
    %v1246 = vmin.f32 %v1214, %v1220
    %v1247 = vsub.f32 %v1245, %v1246
    %v1249 = vrot.slane %v1247, 1
    %v1251 = vmul.f32 %v1247, %v1249
    %v1252 = vsub.f32 %v1251, %v1241
    %v1253 = vadd.f32 %v1251, 1e-07
    %v1254 = vrcp.pop %v1253
    %v1255 = vmul.f32 %v1252, %v1254
    %v1256 = vsub.f32 %v1244, %v1255
    %v1257 = vsub.f32 1.0, %v1256
    %v1258 = vsel %vm29, %v1257, 0.0
    %v1259 = vsel %vm32, %v1258, 0.0
    %1260 = vadd.xlane.f32.xlu0 %v1259
    %v1261 = vpop.xlane.xlu0 %1260
    %v1262 = vrot.slane %v1261, 4
    %v1263 = vadd.f32 %v1261, %v1262
    %v1264 = vrot.slane %v1263, 2
    %v1265 = vadd.f32 %v1263, %v1264
    %v1266 = vrot.slane %v1265, 1
    %v1267 = vadd.f32 %v1265, %v1266
    %s1268 = vtos %v1267
    %v1270 = vrot.slane %v1257, 4
    %v1272 = vsel %vm1160, %v1270, 0.0
    %v1273 = vsel %vm32, %v1272, 0.0
    %1274 = vadd.xlane.f32.xlu0 %v1273
    %v1275 = vpop.xlane.xlu0 %1274
    %v1276 = vrot.slane %v1275, 4
    %v1277 = vadd.f32 %v1275, %v1276
    %v1278 = vrot.slane %v1277, 2
    %v1279 = vadd.f32 %v1277, %v1278
    %v1280 = vrot.slane %v1279, 1
    %v1281 = vadd.f32 %v1279, %v1280
    %s1282 = vtos %v1281
    %s1283 = smul.f32 %s1178, %s46
    %s1284 = sadd.f32 %s1209, 0.0001
    %v1285 = vstv %s1284
    %v1286 = vrcp.pop %v1285
    %s1287 = vtos %v1286
    %s1288 = smul.f32 %s1198, %s1287
    %s1289 = smul.f32 %s1268, %s46
    %v1290 = vstv %s1284
    %v1291 = vrcp.pop %v1290
    %s1292 = vtos %v1291
    %s1293 = smul.f32 %s1282, %s1292
    %vm1294 = vcmp.eq.s32.totalorder %v84, 0
    %v1295 = vstv %s169
    %v1296 = vsel %vm1294, %v1295, 0.0
    %vm1297 = vcmp.eq.s32.totalorder %v84, 1
    %v1298 = vstv %s196
    %v1299 = vsel %vm1297, %v1298, %v1296
    %vm1300 = vcmp.eq.s32.totalorder %v84, 2
    %v1301 = vstv %s242
    %v1302 = vsel %vm1300, %v1301, %v1299
    %vm1303 = vcmp.eq.s32.totalorder %v84, 3
    %v1304 = vstv %s1038
    %v1305 = vsel %vm1303, %v1304, %v1302
    %v1306 = vstv %s1283
    %v1307 = vsel %vm85, %v1306, %v1305
    %vm1308 = vcmp.eq.s32.totalorder %v84, 5
    %v1309 = vstv %s1288
    %v1310 = vsel %vm1308, %v1309, %v1307
    %vm1311 = vcmp.eq.s32.totalorder %v84, 6
    %v1312 = vstv %s1289
    %v1313 = vsel %vm1311, %v1312, %v1310
    %vm1314 = vcmp.eq.s32.totalorder %v84, 7
    %v1315 = vstv %s1293
    %v1316 = vsel %vm1314, %v1315, %v1313
    %1317 = vst [vmem:[#allocation3] sm:$0x1] %v1316
    // Predicated region
    $region30: #{tpu_custom_call.1} parent=1 // pred_check
      _
    $region31: #{tpu_custom_call.1} parent=1 // pred_check_branch
      %1319 = sbr.rel (0) target = $region33
    $region32: #{tpu_custom_call.1} parent=1 // pred_region
      %s1321 = ssub.s32 16, 16
      %1322 = vsyncadd [#allocation4], %s1321
      %s1324 = sshll.u32 [#allocation3], 4
      %s1325 = int_to_ptr.vmem [resolvable:$true] %s1324
      %1327 = dma.vmem_to_hbm [thread:$0]  %s1325, 16, %s7, [#allocation4]
    $region33: #{tpu_custom_call.1} parent=1 // pred_fallthru
      _
    // Predicated region
    $region34: #{tpu_custom_call.1} parent=1 // pred_check
      _
    $region35: #{tpu_custom_call.1} parent=1 // pred_check_branch
      %1329 = sbr.rel (0) target = $region37
    $region36: #{tpu_custom_call.1} parent=1 // pred_region
      %1330 = dma.done [#allocation4], 16
    $region37: #{tpu_custom_call.1} parent=1 // pred_fallthru
      _
    %1331 = vsyncpa [#allocation4], 1

</llo_original>
